<compile_context>
chip_gen: v7x
topology: tpu7x:2x2x1
jax: 0.10.0
libtpu: 0.0.40
codegen_flags: <defaults>
</compile_context>

<pallas_src>
import functools

import jax
import jax.numpy as jnp
from jax.experimental import pallas as pl
from jax.experimental.pallas import tpu as pltpu

_EPS = 1e-5


def _round_up(n, m):
    return -(-n // m) * m


# ---------------------------------------------------------------------------
# Small-batch fused kernel (B <= block_b): single gridless call, everything
# resident in VMEM, exact two-pass batch statistics.
# ---------------------------------------------------------------------------
def _fused_small_kernel(x_ref, w1_ref, gamma_ref, beta_ref, w2_ref, b2_ref,
                        o_ref):
    xb = x_ref[...].astype(jnp.bfloat16)
    h = jnp.dot(xb, w1_ref[...], preferred_element_type=jnp.float32)  # (B,H) f32
    # Training-mode BatchNorm statistics (biased variance); b1 cancels under
    # mean subtraction, so it is never applied.
    mu = jnp.mean(h, axis=0, keepdims=True)
    var = jnp.mean((h - mu) ** 2, axis=0, keepdims=True)
    scale = gamma_ref[...] * jax.lax.rsqrt(var + _EPS)
    shift = beta_ref[...] - mu * scale
    a = jnp.maximum(h * scale + shift, 0.0).astype(jnp.bfloat16)
    o = jnp.dot(a, w2_ref[...], preferred_element_type=jnp.float32)
    o_ref[...] = o + b2_ref[...]


# ---------------------------------------------------------------------------
# Tiled path, phase 1: Linear1 + per-tile shifted column statistics.
# ---------------------------------------------------------------------------
def _linear1_stats_kernel(x_ref, w1_ref, h_ref, stats_ref, *, true_b, block_b):
    i = pl.program_id(0)
    xb = x_ref[...].astype(jnp.bfloat16)
    h = jnp.dot(xb, w1_ref[...], preferred_element_type=jnp.float32)
    h_ref[...] = h.astype(h_ref.dtype)                     # bf16 HBM intermediate
    # Mask rows beyond the true batch (ragged last tile: contents undefined).
    row = i * block_b + jax.lax.broadcasted_iota(jnp.int32, h.shape, 0)
    valid = row < true_b
    # Per-tile, per-column shift (row 0 of a tile is always a valid row) makes
    # the cross-tile variance merge robust when |mean| >> std.
    c = h[0:1, :]
    hc = jnp.where(valid, h - c, 0.0)
    stats_ref[0:1, :] = jnp.sum(hc, axis=0, keepdims=True)        # shifted sum
    stats_ref[1:2, :] = jnp.sum(hc * hc, axis=0, keepdims=True)   # shifted sumsq
    stats_ref[2:3, :] = c                                          # the shift


# ---------------------------------------------------------------------------
# Tiled path, phase 2: folded BatchNorm (one f32 FMA) -> ReLU -> Linear2 (bf16).
# ---------------------------------------------------------------------------
def _bn_relu_linear2_kernel(h_ref, bn_ref, w2_ref, b2_ref, o_ref):
    scale = bn_ref[0:1, :]
    shift = bn_ref[1:2, :]
    a = jnp.maximum(h_ref[...].astype(jnp.float32) * scale + shift, 0.0)
    o = jnp.dot(a.astype(jnp.bfloat16), w2_ref[...],
                preferred_element_type=jnp.float32)
    o_ref[...] = o + b2_ref[...]


@functools.partial(jax.jit, static_argnames=("block_b",))
def imaging_model_wrapper_forward(x, params, *, block_b=512):
    """Forward pass of ImagingModelWrapper ('emb' + 'vit', fusion='middle').

    block_b: batch-tile height.  512 default (>=256 fills the v6e/v7x MXU);
    the tiled path additionally caps the tile so the grid has >= 2 steps
    (v7x megacore).  Batches with B <= block_b take the fused single-call path.
    """
    # PyTorch: if len(x.shape) == 3 and x.shape[1] == 1: x = squeeze(x, dim=1)
    if x.ndim == 3 and x.shape[1] == 1:
        x = jnp.squeeze(x, axis=1)

    w1, w2 = params["w1"], params["w2"]            # bf16, (in, out) layout
    gamma, beta, b2 = params["gamma"], params["beta"], params["b2"]
    B, D = x.shape
    H = w1.shape[1]
    O = w2.shape[1]

    # ----------------------- small-batch fused path ------------------------
    if B <= block_b:
        return pl.pallas_call(
            _fused_small_kernel,
            out_shape=jax.ShapeDtypeStruct((B, O), jnp.float32),
            cost_estimate=pl.CostEstimate(
                flops=2 * B * D * H + 2 * B * H * O + 8 * B * H,
                transcendentals=H,
                bytes_accessed=(B * D * x.dtype.itemsize + D * H * 2
                                + H * O * 2 + 2 * H * 4 + O * 4 + B * O * 4),
            ),
        )(x, w1, gamma, beta, w2, b2)

    # ----------------------- large-batch tiled path ------------------------
    # Tile height: <= block_b, multiple of 128, and small enough that the
    # "parallel" grid has at least 2 steps (so v7x can use both TensorCores).
    bb = min(_round_up(block_b, 128), _round_up(-(-B // 2), 128))
    nb = -(-B // bb)            # ragged last tile handled by in-kernel masking

    parallel = pltpu.CompilerParams(dimension_semantics=("parallel",))

    # phase 1: Linear1 + partial (shifted) batch statistics ------------------
    h, partial = pl.pallas_call(
        functools.partial(_linear1_stats_kernel, true_b=B, block_b=bb),
        grid=(nb,),
        in_specs=[
            pl.BlockSpec((bb, D), lambda i: (i, 0)),       # x tile
            pl.BlockSpec((D, H), lambda i: (0, 0)),        # w1 (resident)
        ],
        out_specs=(
            pl.BlockSpec((bb, H), lambda i: (i, 0)),       # h tile (bf16)
            pl.BlockSpec((None, 3, H), lambda i: (i, 0, 0)),  # per-tile stats
        ),
        out_shape=(
            jax.ShapeDtypeStruct((B, H), jnp.bfloat16),
            jax.ShapeDtypeStruct((nb, 3, H), jnp.float32),
        ),
        compiler_params=parallel,
        cost_estimate=pl.CostEstimate(
            flops=2 * B * D * H + 6 * B * H,
            transcendentals=0,
            bytes_accessed=(B * D * x.dtype.itemsize + D * H * 2
                            + B * H * 2 + nb * 3 * H * 4),
        ),
    )(x, w1)

    # tiny XLA glue: merge per-tile shifted statistics, fold BN --------------
    s = partial[:, 0, :]                                   # (nb, H) shifted sums
    q = partial[:, 1, :]                                   # (nb, H) shifted sumsq
    c = partial[:, 2, :]                                   # (nb, H) shifts
    n = jnp.minimum(bb, B - jnp.arange(nb) * bb).astype(jnp.float32)[:, None]
    mu = jnp.sum(s + n * c, axis=0, keepdims=True) / B     # (1, H)
    d = mu - c                                             # (nb, H)
    var = jnp.maximum(
        jnp.sum(q - 2.0 * d * s + n * d * d, axis=0, keepdims=True) / B, 0.0)
    scale = gamma * jax.lax.rsqrt(var + _EPS)
    shift = beta - mu * scale
    bn = jnp.concatenate([scale, shift], axis=0)           # (2, H), one DMA slab

    # phase 2: folded BN + ReLU + Linear2 ------------------------------------
    out = pl.pallas_call(
        _bn_relu_linear2_kernel,
        grid=(nb,),
        in_specs=[
            pl.BlockSpec((bb, H), lambda i: (i, 0)),       # h tile (bf16)
            pl.BlockSpec((2, H), lambda i: (0, 0)),        # scale/shift slab
            pl.BlockSpec((H, O), lambda i: (0, 0)),        # w2 (resident)
            pl.BlockSpec((1, O), lambda i: (0, 0)),        # b2
        ],
        out_specs=pl.BlockSpec((bb, O), lambda i: (i, 0)),
        out_shape=jax.ShapeDtypeStruct((B, O), jnp.float32),
        compiler_params=parallel,
        cost_estimate=pl.CostEstimate(
            flops=2 * B * H * O + 3 * B * H,
            transcendentals=0,
            bytes_accessed=B * H * 2 + 2 * H * 4 + H * O * 2 + O * 4 + B * O * 4,
        ),
    )(h, bn, w2, b2)
    return out


def init_params(key, dim=768, out_dim=128, layers=2):
    """Deterministic parameter init matching the module's __init__ for
    arch='ViTEMB', layers=2: Linear(768,384), BN(384), ReLU, Linear(384,128).
    Linear weights get xavier_uniform_ (as in the module); biases keep the
    default PyTorch Linear bias init; BN gamma=1, beta=0.  Weights are stored
    bf16 (halves weight DMA; native MXU dtype)."""
    assert layers == 2, "script instantiates the layers=2 configuration"
    hid = dim // 2
    k1, k2, k3, k4 = jax.random.split(key, 4)

    def xavier(k, fan_in, fan_out):
        limit = (6.0 / (fan_in + fan_out)) ** 0.5
        # stored as (in, out) == transpose of torch's (out, in) weight
        w = jax.random.uniform(k, (fan_in, fan_out), jnp.float32,
                               minval=-limit, maxval=limit)
        return w.astype(jnp.bfloat16)

    def bias(k, fan_in, fan_out):
        bound = 1.0 / (fan_in ** 0.5)
        return jax.random.uniform(k, (1, fan_out), jnp.float32,
                                  minval=-bound, maxval=bound)

    return {
        "w1": xavier(k1, dim, hid),
        # b1 is kept for reference fidelity but is a provable no-op under
        # training-mode BatchNorm (mean subtraction cancels it); the Pallas
        # kernels never load it.
        "b1": bias(k2, dim, hid),
        "gamma": jnp.ones((1, hid), jnp.float32),
        "beta": jnp.zeros((1, hid), jnp.float32),
        "w2": xavier(k3, hid, out_dim),
        "b2": bias(k4, hid, out_dim),
    }


def _reference_forward(x, params, eps=_EPS):
    """Pure-JAX reference of the same forward pass (training-mode BatchNorm1d
    with biased variance, eps=1e-5), including the b1 bias that the kernels
    provably drop.  Keeps h and Linear-2 in f32 (the kernels use bf16
    intermediates, hence the relaxed comparison tolerance below)."""
    if x.ndim == 3 and x.shape[1] == 1:
        x = jnp.squeeze(x, axis=1)
    h = jnp.dot(x.astype(jnp.bfloat16), params["w1"],
                preferred_element_type=jnp.float32) + params["b1"]
    mu = jnp.mean(h, axis=0, keepdims=True)
    var = jnp.mean((h - mu) ** 2, axis=0, keepdims=True)
    h = (h - mu) * jax.lax.rsqrt(var + eps) * params["gamma"] + params["beta"]
    h = jnp.maximum(h, 0.0)
    return jnp.dot(h, params["w2"].astype(jnp.float32),
                   preferred_element_type=jnp.float32,
                   precision=jax.lax.Precision.HIGHEST) + params["b2"]


if __name__ == "__main__":
    key = jax.random.PRNGKey(0)
    k_x, k_p, k_x2, k_x3 = jax.random.split(key, 4)

    DIM, OUT_DIM = 768, 128                 # dim=768 is fixed by the module
    params = init_params(k_p, dim=DIM, out_dim=OUT_DIM, layers=2)

    # Tolerance reflects the bf16 h intermediate / bf16 Linear-2 matmul in the
    # kernels vs the f32 reference (outputs are O(1)).
    def check(out, ref, name):
        err = float(jnp.max(jnp.abs(out - ref)))
        assert jnp.allclose(out, ref, atol=2e-2, rtol=2e-3), (name, err)

    # 1) emb-branch input (B, 1, 768), tiny batch -> fused single-call path.
    B = 2
    x = jax.random.normal(k_x, (B, 1, DIM), dtype=jnp.float32)
    out = jax.block_until_ready(imaging_model_wrapper_forward(x, params))
    assert out.shape == (B, OUT_DIM), out.shape
    check(out, _reference_forward(x, params), "fused tiny batch")

    # 2) mid-size batch, still <= block_b -> fused path with full batch stats.
    B2 = 300
    x2 = jax.random.normal(k_x2, (B2, DIM), dtype=jnp.float32)
    out2 = jax.block_until_ready(imaging_model_wrapper_forward(x2, params))
    assert out2.shape == (B2, OUT_DIM), out2.shape
    check(out2, _reference_forward(x2, params), "fused mid batch")

    # 3) batch > block_b with a ragged last tile -> tiled two-phase path
    #    (exercises cross-tile shifted statistics + in-kernel row masking,
    #    no jnp.pad copy of x).
    B3 = 777
    x3 = jax.random.normal(k_x3, (B3, DIM), dtype=jnp.float32)
    out3 = jax.block_until_ready(
        imaging_model_wrapper_forward(x3, params, block_b=256))
    assert out3.shape == (B3, OUT_DIM), out3.shape
    check(out3, _reference_forward(x3, params), "tiled ragged batch")

    print("KERNEL_OK")
</pallas_src>

<mosaic_0001>
module attributes {stable_mosaic.version = 11 : i64} {
  func.func @_fused_small_kernel(%arg0: memref<2x768xf32, #tpu.memory_space<vmem>>, %arg1: memref<768x384xbf16, #tpu.memory_space<vmem>>, %arg2: memref<1x384xf32, #tpu.memory_space<vmem>>, %arg3: memref<1x384xf32, #tpu.memory_space<vmem>>, %arg4: memref<384x128xbf16, #tpu.memory_space<vmem>>, %arg5: memref<1x128xf32, #tpu.memory_space<vmem>>, %arg6: memref<2x128xf32, #tpu.memory_space<vmem>>) attributes {dimension_semantics = [], scalar_prefetch = 0 : i64, scratch_operands = 0 : i64, tpu.core_type = #tpu.core_type<tc>} {
    %c0 = arith.constant 0 : index
    %c0_0 = arith.constant 0 : index
    %0 = vector.load %arg0[%c0, %c0_0] : memref<2x768xf32, #tpu.memory_space<vmem>>, vector<2x768xf32>
    %1 = arith.truncf %0 : vector<2x768xf32> to vector<2x768xbf16>
    %c0_1 = arith.constant 0 : index
    %c0_2 = arith.constant 0 : index
    %2 = vector.load %arg1[%c0_1, %c0_2] : memref<768x384xbf16, #tpu.memory_space<vmem>>, vector<768x384xbf16>
    %cst = arith.constant dense<0.000000e+00> : vector<2x384xf32>
    %3 = tpu.matmul %1, %2, %cst {dimension_numbers = #tpu.dot_dimension_numbers<[1], [0], [0], [1], [0, 0, 1, 1], [], []>} : vector<2x768xbf16>, vector<768x384xbf16>, vector<2x384xf32> -> vector<2x384xf32>
    %cst_3 = arith.constant dense<0.000000e+00> : vector<384xf32>
    %4 = vector.multi_reduction <add>, %3, %cst_3 [0] : vector<2x384xf32> to vector<384xf32>
    %5 = vector.shape_cast %4 : vector<384xf32> to vector<1x384xf32>
    %cst_4 = arith.constant 2.000000e+00 : f32
    %6 = vector.broadcast %cst_4 : f32 to vector<1x384xf32>
    %7 = arith.divf %5, %6 : vector<1x384xf32>
    %8 = vector.broadcast %7 : vector<1x384xf32> to vector<2x384xf32>
    %9 = arith.subf %3, %8 : vector<2x384xf32>
    %10 = arith.mulf %9, %9 : vector<2x384xf32>
    %cst_5 = arith.constant dense<0.000000e+00> : vector<384xf32>
    %11 = vector.multi_reduction <add>, %10, %cst_5 [0] : vector<2x384xf32> to vector<384xf32>
    %12 = vector.shape_cast %11 : vector<384xf32> to vector<1x384xf32>
    %cst_6 = arith.constant 2.000000e+00 : f32
    %13 = vector.broadcast %cst_6 : f32 to vector<1x384xf32>
    %14 = arith.divf %12, %13 : vector<1x384xf32>
    %c0_7 = arith.constant 0 : index
    %c0_8 = arith.constant 0 : index
    %15 = vector.load %arg2[%c0_7, %c0_8] : memref<1x384xf32, #tpu.memory_space<vmem>>, vector<1x384xf32>
    %cst_9 = arith.constant 9.99999974E-6 : f32
    %16 = vector.broadcast %cst_9 : f32 to vector<1x384xf32>
    %17 = arith.addf %14, %16 : vector<1x384xf32>
    %18 = math.rsqrt %17 : vector<1x384xf32>
    %19 = arith.mulf %15, %18 : vector<1x384xf32>
    %c0_10 = arith.constant 0 : index
    %c0_11 = arith.constant 0 : index
    %20 = vector.load %arg3[%c0_10, %c0_11] : memref<1x384xf32, #tpu.memory_space<vmem>>, vector<1x384xf32>
    %21 = arith.mulf %7, %19 : vector<1x384xf32>
    %22 = arith.subf %20, %21 : vector<1x384xf32>
    %23 = vector.broadcast %19 : vector<1x384xf32> to vector<2x384xf32>
    %24 = arith.mulf %3, %23 : vector<2x384xf32>
    %25 = vector.broadcast %22 : vector<1x384xf32> to vector<2x384xf32>
    %26 = arith.addf %24, %25 : vector<2x384xf32>
    %cst_12 = arith.constant 0.000000e+00 : f32
    %27 = vector.broadcast %cst_12 : f32 to vector<2x384xf32>
    %28 = arith.maximumf %26, %27 : vector<2x384xf32>
    %29 = arith.truncf %28 : vector<2x384xf32> to vector<2x384xbf16>
    %c0_13 = arith.constant 0 : index
    %c0_14 = arith.constant 0 : index
    %30 = vector.load %arg4[%c0_13, %c0_14] : memref<384x128xbf16, #tpu.memory_space<vmem>>, vector<384x128xbf16>
    %cst_15 = arith.constant dense<0.000000e+00> : vector<2x128xf32>
    %31 = tpu.matmul %29, %30, %cst_15 {dimension_numbers = #tpu.dot_dimension_numbers<[1], [0], [0], [1], [0, 0, 1, 1], [], []>} : vector<2x384xbf16>, vector<384x128xbf16>, vector<2x128xf32> -> vector<2x128xf32>
    %c0_16 = arith.constant 0 : index
    %c0_17 = arith.constant 0 : index
    %32 = vector.load %arg5[%c0_16, %c0_17] : memref<1x128xf32, #tpu.memory_space<vmem>>, vector<1x128xf32>
    %33 = vector.broadcast %32 : vector<1x128xf32> to vector<2x128xf32>
    %34 = arith.addf %31, %33 : vector<2x128xf32>
    %c0_18 = arith.constant 0 : index
    %c0_19 = arith.constant 0 : index
    %35 = vector.load %arg6[%c0_18, %c0_19] : memref<2x128xf32, #tpu.memory_space<vmem>>, vector<2x128xf32>
    tpu.vector_store %arg6[%c0_18, %c0_19], %34 {strides = array<i32>} : memref<2x128xf32, #tpu.memory_space<vmem>>, vector<2x128xf32>,
    return
  }
}

</mosaic_0001>

<llo_original>
// kernel: imaging_model_wrapper_forward.1
$region0: #{imaging_model_wrapper_forward.1}
  #allocation0 [shape = 'u32[]', space=smem, size = 0x4, offset = 0x4, fixed_abs, tag = 'smem constant byte address 0x4 - core index']
  #allocation1 [shape = 'u32[144,128]{1,0:T(1,128)}', space=vmem, size = 0x12000, scoped, tag = 'internal scratch']
  %s0 = inlined_call_operand.vmem [shape: f32[2,768], index: 0, kind: input, shape index: {}]
  %s1 = inlined_call_operand.hbm [shape: bf16[768,384], index: 1, kind: input, shape index: {}]
  %s2 = inlined_call_operand.vmem [shape: f32[1,384], index: 2, kind: input, shape index: {}]
  %s3 = inlined_call_operand.vmem [shape: f32[1,384], index: 3, kind: input, shape index: {}]
  %s4 = inlined_call_operand.hbm [shape: bf16[384,128], index: 4, kind: input, shape index: {}]
  %s5 = inlined_call_operand.vmem [shape: f32[1,128], index: 5, kind: input, shape index: {}]
  %s6 = inlined_call_operand.hbm [shape: f32[2,128], index: 6, kind: output, shape index: {}]
  %s7 = sld [smem:[#allocation0]]
  $region42: #{imaging_model_wrapper_forward.1} parent=0
    _
  %s9 = ssub.s32 1, %s7
  %s10 = scalar_select 0, %s9, %s7
  $region1: #{imaging_model_wrapper_forward.1} parent=0
    #allocation2 [shape = 'u8[589824]{0}', space=vmem, size = 0x90000, scoped, tag = 'input window, operand 1, single buffered']
    #allocation3 [shape = 's32[1]{0}', space=sflag, size = 0x4, scoped, tag = 'scoped memory for imaging_model_wrapper_forward.1']
    #allocation4 [shape = 's32[1]{0}', space=sflag, size = 0x4, scoped, tag = 'scoped memory for imaging_model_wrapper_forward.1']
    #allocation5 [shape = 'u8[98304]{0}', space=vmem, size = 0x18000, scoped, tag = 'input window, operand 4, single buffered']
    #allocation6 [shape = 's32[1]{0}', space=sflag, size = 0x4, scoped, tag = 'scoped memory for imaging_model_wrapper_forward.1']
    #allocation7 [shape = 'u8[1024]{0}', space=vmem, size = 0x400, scoped, tag = 'output window, operand 0, single buffered']
    %11 = vsyncpa [#allocation3], 0
    %12 = vsyncpa [#allocation6], 0
    %13 = vsyncpa [#allocation4], 0
    // Predicated region
    $region2: #{imaging_model_wrapper_forward.1} parent=1 // pred_check
      _
    $region3: #{imaging_model_wrapper_forward.1} parent=1 // pred_check_branch
      %15 = sbr.rel (0) target = $region5
    $region4: #{imaging_model_wrapper_forward.1} parent=1 // pred_region
      _
    $region5: #{imaging_model_wrapper_forward.1} parent=1 // pred_fallthru
      _
    // Predicated region
    $region6: #{imaging_model_wrapper_forward.1} parent=1 // pred_check
      _
    $region7: #{imaging_model_wrapper_forward.1} parent=1 // pred_check_branch
      %17 = sbr.rel (0) target = $region9
    $region8: #{imaging_model_wrapper_forward.1} parent=1 // pred_region
      %s19 = ssub.s32 18432, 18432
      %20 = vsyncadd [#allocation3], %s19
      %s21 = sshll.u32 [#allocation2], 4
      %s22 = int_to_ptr.vmem [resolvable:$true] %s21
      %27 = dma.hbm_to_vmem [thread:$0]  %s1, 18432, %s22, [#allocation3], 192, 192, 12
    $region9: #{imaging_model_wrapper_forward.1} parent=1 // pred_fallthru
      _
    // Predicated region
    $region10: #{imaging_model_wrapper_forward.1} parent=1 // pred_check
      _
    $region11: #{imaging_model_wrapper_forward.1} parent=1 // pred_check_branch
      %29 = sbr.rel (0) target = $region13
    $region12: #{imaging_model_wrapper_forward.1} parent=1 // pred_region
      _
    $region13: #{imaging_model_wrapper_forward.1} parent=1 // pred_fallthru
      _
    // Predicated region
    $region14: #{imaging_model_wrapper_forward.1} parent=1 // pred_check
      _
    $region15: #{imaging_model_wrapper_forward.1} parent=1 // pred_check_branch
      %31 = sbr.rel (0) target = $region17
    $region16: #{imaging_model_wrapper_forward.1} parent=1 // pred_region
      _
    $region17: #{imaging_model_wrapper_forward.1} parent=1 // pred_fallthru
      _
    // Predicated region
    $region18: #{imaging_model_wrapper_forward.1} parent=1 // pred_check
      _
    $region19: #{imaging_model_wrapper_forward.1} parent=1 // pred_check_branch
      %33 = sbr.rel (0) target = $region21
    $region20: #{imaging_model_wrapper_forward.1} parent=1 // pred_region
      %s35 = ssub.s32 3072, 3072
      %36 = vsyncadd [#allocation6], %s35
      %s37 = sshll.u32 [#allocation5], 4
      %s38 = int_to_ptr.vmem [resolvable:$true] %s37
      %43 = dma.hbm_to_vmem [thread:$0]  %s4, 3072, %s38, [#allocation6], 64, 64, 4
    $region21: #{imaging_model_wrapper_forward.1} parent=1 // pred_fallthru
      _
    // Predicated region
    $region22: #{imaging_model_wrapper_forward.1} parent=1 // pred_check
      _
    $region23: #{imaging_model_wrapper_forward.1} parent=1 // pred_check_branch
      %45 = sbr.rel (0) target = $region25
    $region24: #{imaging_model_wrapper_forward.1} parent=1 // pred_region
      _
    $region25: #{imaging_model_wrapper_forward.1} parent=1 // pred_fallthru
      _
    // Predicated region
    $region26: #{imaging_model_wrapper_forward.1} parent=1 // pred_check
      _
    $region27: #{imaging_model_wrapper_forward.1} parent=1 // pred_check_branch
      %47 = sbr.rel (0) target = $region29
    $region28: #{imaging_model_wrapper_forward.1} parent=1 // pred_region
      %48 = dma.done [#allocation3], 18432
    $region29: #{imaging_model_wrapper_forward.1} parent=1 // pred_fallthru
      _
    // Predicated region
    $region30: #{imaging_model_wrapper_forward.1} parent=1 // pred_check
      _
    $region31: #{imaging_model_wrapper_forward.1} parent=1 // pred_check_branch
      %50 = sbr.rel (0) target = $region33
    $region32: #{imaging_model_wrapper_forward.1} parent=1 // pred_region
      %51 = dma.done [#allocation6], 3072
    $region33: #{imaging_model_wrapper_forward.1} parent=1 // pred_fallthru
      _
    %v53 = vld [vmem:[%s0] sm:$0xff]
    %v54 = vld [vmem:[%s0 + $0x8] sm:$0xf]
    %v57 = vcombine.high %v53, %v53
    %v59 = vunpack.c.l.s4 1983009808
    %v60 = vunpack.c.0.s8 %v59
    %v61 = vlaneseq
    %v62 = vshrl.u32 %v61, 7
    %v63 = vsub.s32 %v60, %v62
    %v64 = vrot.slane %v53, %v63
    %v66 = vunpack.c.l.s4 1983009808
    %v67 = vunpack.c.0.s8 %v66
    %v68 = vlaneseq
    %v69 = vshrl.u32 %v68, 7
    %v70 = vsub.s32 %v67, %v69
    %v71 = vrot.slane %v57, %v70
    %v72 = vcombine.high %v64, %v64
    %v73 = vcombine.high %v71, %v71
    %v75 = vunpack.c.l.s4 1983009808
    %v76 = vunpack.c.0.s8 %v75
    %v77 = vlaneseq
    %v78 = vshrl.u32 %v77, 7
    %v79 = vsub.s32 %v76, %v78
    %v80 = vrot.slane %v54, %v79
    %v81 = vcombine.high %v80, %v80
    %v88 = vpack.c.bf16 %v64, %v64
    %v89 = vpack.c.bf16 %v72, %v72
    %v90 = vpack.c.bf16 %v71, %v71
    %v91 = vpack.c.bf16 %v73, %v73
    %v92 = vpack.c.bf16 %v80, %v80
    %v93 = vpack.c.bf16 %v81, %v81
    %v94 = vld [vmem:[#allocation2] sm:$0xff]
    %v95 = vld [vmem:[#allocation2 + $0x8] sm:$0xf]
    %v96 = vld [vmem:[#allocation2 + $0xc] sm:$0xff]
    %v97 = vld [vmem:[#allocation2 + $0x14] sm:$0xf]
    %v98 = vld [vmem:[#allocation2 + $0x18] sm:$0xff]
    %v99 = vld [vmem:[#allocation2 + $0x20] sm:$0xf]
    %v100 = vld [vmem:[#allocation2 + $0x24] sm:$0xff]
    %v101 = vld [vmem:[#allocation2 + $0x2c] sm:$0xf]
    %v102 = vld [vmem:[#allocation2 + $0x30] sm:$0xff]
    %v103 = vld [vmem:[#allocation2 + $0x38] sm:$0xf]
    %v104 = vld [vmem:[#allocation2 + $0x3c] sm:$0xff]
    %v105 = vld [vmem:[#allocation2 + $0x44] sm:$0xf]
    %v106 = vld [vmem:[#allocation2 + $0x48] sm:$0xff]
    %v107 = vld [vmem:[#allocation2 + $0x50] sm:$0xf]
    %v108 = vld [vmem:[#allocation2 + $0x54] sm:$0xff]
    %v109 = vld [vmem:[#allocation2 + $0x5c] sm:$0xf]
    %v110 = vld [vmem:[#allocation2 + $0x60] sm:$0xff]
    %v111 = vld [vmem:[#allocation2 + $0x68] sm:$0xf]
    %v112 = vld [vmem:[#allocation2 + $0x6c] sm:$0xff]
    %v113 = vld [vmem:[#allocation2 + $0x74] sm:$0xf]
    %v114 = vld [vmem:[#allocation2 + $0x78] sm:$0xff]
    %v115 = vld [vmem:[#allocation2 + $0x80] sm:$0xf]
    %v116 = vld [vmem:[#allocation2 + $0x84] sm:$0xff]
    %v117 = vld [vmem:[#allocation2 + $0x8c] sm:$0xf]
    %v118 = vld [vmem:[#allocation2 + $0x90] sm:$0xff]
    %v119 = vld [vmem:[#allocation2 + $0x98] sm:$0xf]
    %v120 = vld [vmem:[#allocation2 + $0x9c] sm:$0xff]
    %v121 = vld [vmem:[#allocation2 + $0xa4] sm:$0xf]
    %v122 = vld [vmem:[#allocation2 + $0xa8] sm:$0xff]
    %v123 = vld [vmem:[#allocation2 + $0xb0] sm:$0xf]
    %v124 = vld [vmem:[#allocation2 + $0xb4] sm:$0xff]
    %v125 = vld [vmem:[#allocation2 + $0xbc] sm:$0xf]
    %v126 = vld [vmem:[#allocation2 + $0xc0] sm:$0xff]
    %v127 = vld [vmem:[#allocation2 + $0xc8] sm:$0xf]
    %v128 = vld [vmem:[#allocation2 + $0xcc] sm:$0xff]
    %v129 = vld [vmem:[#allocation2 + $0xd4] sm:$0xf]
    %v130 = vld [vmem:[#allocation2 + $0xd8] sm:$0xff]
    %v131 = vld [vmem:[#allocation2 + $0xe0] sm:$0xf]
    %v132 = vld [vmem:[#allocation2 + $0xe4] sm:$0xff]
    %v133 = vld [vmem:[#allocation2 + $0xec] sm:$0xf]
    %v134 = vld [vmem:[#allocation2 + $0xf0] sm:$0xff]
    %v135 = vld [vmem:[#allocation2 + $0xf8] sm:$0xf]
    %v136 = vld [vmem:[#allocation2 + $0xfc] sm:$0xff]
    %v137 = vld [vmem:[#allocation2 + $0x104] sm:$0xf]
    %v138 = vld [vmem:[#allocation2 + $0x108] sm:$0xff]
    %v139 = vld [vmem:[#allocation2 + $0x110] sm:$0xf]
    %v140 = vld [vmem:[#allocation2 + $0x114] sm:$0xff]
    %v141 = vld [vmem:[#allocation2 + $0x11c] sm:$0xf]
    %v142 = vld [vmem:[#allocation2 + $0x120] sm:$0xff]
    %v143 = vld [vmem:[#allocation2 + $0x128] sm:$0xf]
    %v144 = vld [vmem:[#allocation2 + $0x12c] sm:$0xff]
    %v145 = vld [vmem:[#allocation2 + $0x134] sm:$0xf]
    %v146 = vld [vmem:[#allocation2 + $0x138] sm:$0xff]
    %v147 = vld [vmem:[#allocation2 + $0x140] sm:$0xf]
    %v148 = vld [vmem:[#allocation2 + $0x144] sm:$0xff]
    %v149 = vld [vmem:[#allocation2 + $0x14c] sm:$0xf]
    %v150 = vld [vmem:[#allocation2 + $0x150] sm:$0xff]
    %v151 = vld [vmem:[#allocation2 + $0x158] sm:$0xf]
    %v152 = vld [vmem:[#allocation2 + $0x15c] sm:$0xff]
    %v153 = vld [vmem:[#allocation2 + $0x164] sm:$0xf]
    %v154 = vld [vmem:[#allocation2 + $0x168] sm:$0xff]
    %v155 = vld [vmem:[#allocation2 + $0x170] sm:$0xf]
    %v156 = vld [vmem:[#allocation2 + $0x174] sm:$0xff]
    %v157 = vld [vmem:[#allocation2 + $0x17c] sm:$0xf]
    %v158 = vld [vmem:[#allocation2 + $0x180] sm:$0xff]
    %v159 = vld [vmem:[#allocation2 + $0x188] sm:$0xf]
    %v160 = vld [vmem:[#allocation2 + $0x18c] sm:$0xff]
    %v161 = vld [vmem:[#allocation2 + $0x194] sm:$0xf]
    %v162 = vld [vmem:[#allocation2 + $0x198] sm:$0xff]
    %v163 = vld [vmem:[#allocation2 + $0x1a0] sm:$0xf]
    %v164 = vld [vmem:[#allocation2 + $0x1a4] sm:$0xff]
    %v165 = vld [vmem:[#allocation2 + $0x1ac] sm:$0xf]
    %v166 = vld [vmem:[#allocation2 + $0x1b0] sm:$0xff]
    %v167 = vld [vmem:[#allocation2 + $0x1b8] sm:$0xf]
    %v168 = vld [vmem:[#allocation2 + $0x1bc] sm:$0xff]
    %v169 = vld [vmem:[#allocation2 + $0x1c4] sm:$0xf]
    %v170 = vld [vmem:[#allocation2 + $0x1c8] sm:$0xff]
    %v171 = vld [vmem:[#allocation2 + $0x1d0] sm:$0xf]
    %v172 = vld [vmem:[#allocation2 + $0x1d4] sm:$0xff]
    %v173 = vld [vmem:[#allocation2 + $0x1dc] sm:$0xf]
    %v174 = vld [vmem:[#allocation2 + $0x1e0] sm:$0xff]
    %v175 = vld [vmem:[#allocation2 + $0x1e8] sm:$0xf]
    %v176 = vld [vmem:[#allocation2 + $0x1ec] sm:$0xff]
    %v177 = vld [vmem:[#allocation2 + $0x1f4] sm:$0xf]
    %v178 = vld [vmem:[#allocation2 + $0x1f8] sm:$0xff]
    %v179 = vld [vmem:[#allocation2 + $0x200] sm:$0xf]
    %v180 = vld [vmem:[#allocation2 + $0x204] sm:$0xff]
    %v181 = vld [vmem:[#allocation2 + $0x20c] sm:$0xf]
    %v182 = vld [vmem:[#allocation2 + $0x210] sm:$0xff]
    %v183 = vld [vmem:[#allocation2 + $0x218] sm:$0xf]
    %v184 = vld [vmem:[#allocation2 + $0x21c] sm:$0xff]
    %v185 = vld [vmem:[#allocation2 + $0x224] sm:$0xf]
    %v186 = vld [vmem:[#allocation2 + $0x228] sm:$0xff]
    %v187 = vld [vmem:[#allocation2 + $0x230] sm:$0xf]
    %v188 = vld [vmem:[#allocation2 + $0x234] sm:$0xff]
    %v189 = vld [vmem:[#allocation2 + $0x23c] sm:$0xf]
    %v190 = vld [vmem:[#allocation2 + $0x240] sm:$0xff]
    %v191 = vld [vmem:[#allocation2 + $0x248] sm:$0xf]
    %v192 = vld [vmem:[#allocation2 + $0x24c] sm:$0xff]
    %v193 = vld [vmem:[#allocation2 + $0x254] sm:$0xf]
    %v194 = vld [vmem:[#allocation2 + $0x258] sm:$0xff]
    %v195 = vld [vmem:[#allocation2 + $0x260] sm:$0xf]
    %v196 = vld [vmem:[#allocation2 + $0x264] sm:$0xff]
    %v197 = vld [vmem:[#allocation2 + $0x26c] sm:$0xf]
    %v198 = vld [vmem:[#allocation2 + $0x270] sm:$0xff]
    %v199 = vld [vmem:[#allocation2 + $0x278] sm:$0xf]
    %v200 = vld [vmem:[#allocation2 + $0x27c] sm:$0xff]
    %v201 = vld [vmem:[#allocation2 + $0x284] sm:$0xf]
    %v202 = vld [vmem:[#allocation2 + $0x288] sm:$0xff]
    %v203 = vld [vmem:[#allocation2 + $0x290] sm:$0xf]
    %v204 = vld [vmem:[#allocation2 + $0x294] sm:$0xff]
    %v205 = vld [vmem:[#allocation2 + $0x29c] sm:$0xf]
    %v206 = vld [vmem:[#allocation2 + $0x2a0] sm:$0xff]
    %v207 = vld [vmem:[#allocation2 + $0x2a8] sm:$0xf]
    %v208 = vld [vmem:[#allocation2 + $0x2ac] sm:$0xff]
    %v209 = vld [vmem:[#allocation2 + $0x2b4] sm:$0xf]
    %v210 = vld [vmem:[#allocation2 + $0x2b8] sm:$0xff]
    %v211 = vld [vmem:[#allocation2 + $0x2c0] sm:$0xf]
    %v212 = vld [vmem:[#allocation2 + $0x2c4] sm:$0xff]
    %v213 = vld [vmem:[#allocation2 + $0x2cc] sm:$0xf]
    %v214 = vld [vmem:[#allocation2 + $0x2d0] sm:$0xff]
    %v215 = vld [vmem:[#allocation2 + $0x2d8] sm:$0xf]
    %v216 = vld [vmem:[#allocation2 + $0x2dc] sm:$0xff]
    %v217 = vld [vmem:[#allocation2 + $0x2e4] sm:$0xf]
    %v218 = vld [vmem:[#allocation2 + $0x2e8] sm:$0xff]
    %v219 = vld [vmem:[#allocation2 + $0x2f0] sm:$0xf]
    %v220 = vld [vmem:[#allocation2 + $0x2f4] sm:$0xff]
    %v221 = vld [vmem:[#allocation2 + $0x2fc] sm:$0xf]
    %v222 = vld [vmem:[#allocation2 + $0x300] sm:$0xff]
    %v223 = vld [vmem:[#allocation2 + $0x308] sm:$0xf]
    %v224 = vld [vmem:[#allocation2 + $0x30c] sm:$0xff]
    %v225 = vld [vmem:[#allocation2 + $0x314] sm:$0xf]
    %v226 = vld [vmem:[#allocation2 + $0x318] sm:$0xff]
    %v227 = vld [vmem:[#allocation2 + $0x320] sm:$0xf]
    %v228 = vld [vmem:[#allocation2 + $0x324] sm:$0xff]
    %v229 = vld [vmem:[#allocation2 + $0x32c] sm:$0xf]
    %v230 = vld [vmem:[#allocation2 + $0x330] sm:$0xff]
    %v231 = vld [vmem:[#allocation2 + $0x338] sm:$0xf]
    %v232 = vld [vmem:[#allocation2 + $0x33c] sm:$0xff]
    %v233 = vld [vmem:[#allocation2 + $0x344] sm:$0xf]
    %v234 = vld [vmem:[#allocation2 + $0x348] sm:$0xff]
    %v235 = vld [vmem:[#allocation2 + $0x350] sm:$0xf]
    %v236 = vld [vmem:[#allocation2 + $0x354] sm:$0xff]
    %v237 = vld [vmem:[#allocation2 + $0x35c] sm:$0xf]
    %v238 = vld [vmem:[#allocation2 + $0x360] sm:$0xff]
    %v239 = vld [vmem:[#allocation2 + $0x368] sm:$0xf]
    %v240 = vld [vmem:[#allocation2 + $0x36c] sm:$0xff]
    %v241 = vld [vmem:[#allocation2 + $0x374] sm:$0xf]
    %v242 = vld [vmem:[#allocation2 + $0x378] sm:$0xff]
    %v243 = vld [vmem:[#allocation2 + $0x380] sm:$0xf]
    %v244 = vld [vmem:[#allocation2 + $0x384] sm:$0xff]
    %v245 = vld [vmem:[#allocation2 + $0x38c] sm:$0xf]
    %v246 = vld [vmem:[#allocation2 + $0x390] sm:$0xff]
    %v247 = vld [vmem:[#allocation2 + $0x398] sm:$0xf]
    %v248 = vld [vmem:[#allocation2 + $0x39c] sm:$0xff]
    %v249 = vld [vmem:[#allocation2 + $0x3a4] sm:$0xf]
    %v250 = vld [vmem:[#allocation2 + $0x3a8] sm:$0xff]
    %v251 = vld [vmem:[#allocation2 + $0x3b0] sm:$0xf]
    %v252 = vld [vmem:[#allocation2 + $0x3b4] sm:$0xff]
    %v253 = vld [vmem:[#allocation2 + $0x3bc] sm:$0xf]
    %v254 = vld [vmem:[#allocation2 + $0x3c0] sm:$0xff]
    %v255 = vld [vmem:[#allocation2 + $0x3c8] sm:$0xf]
    %v256 = vld [vmem:[#allocation2 + $0x3cc] sm:$0xff]
    %v257 = vld [vmem:[#allocation2 + $0x3d4] sm:$0xf]
    %v258 = vld [vmem:[#allocation2 + $0x3d8] sm:$0xff]
    %v259 = vld [vmem:[#allocation2 + $0x3e0] sm:$0xf]
    %v260 = vld [vmem:[#allocation2 + $0x3e4] sm:$0xff]
    %v261 = vld [vmem:[#allocation2 + $0x3ec] sm:$0xf]
    %v262 = vld [vmem:[#allocation2 + $0x3f0] sm:$0xff]
    %v263 = vld [vmem:[#allocation2 + $0x3f8] sm:$0xf]
    %v264 = vld [vmem:[#allocation2 + $0x3fc] sm:$0xff]
    %v265 = vld [vmem:[#allocation2 + $0x404] sm:$0xf]
    %v266 = vld [vmem:[#allocation2 + $0x408] sm:$0xff]
    %v267 = vld [vmem:[#allocation2 + $0x410] sm:$0xf]
    %v268 = vld [vmem:[#allocation2 + $0x414] sm:$0xff]
    %v269 = vld [vmem:[#allocation2 + $0x41c] sm:$0xf]
    %v270 = vld [vmem:[#allocation2 + $0x420] sm:$0xff]
    %v271 = vld [vmem:[#allocation2 + $0x428] sm:$0xf]
    %v272 = vld [vmem:[#allocation2 + $0x42c] sm:$0xff]
    %v273 = vld [vmem:[#allocation2 + $0x434] sm:$0xf]
    %v274 = vld [vmem:[#allocation2 + $0x438] sm:$0xff]
    %v275 = vld [vmem:[#allocation2 + $0x440] sm:$0xf]
    %v276 = vld [vmem:[#allocation2 + $0x444] sm:$0xff]
    %v277 = vld [vmem:[#allocation2 + $0x44c] sm:$0xf]
    %v278 = vld [vmem:[#allocation2 + $0x450] sm:$0xff]
    %v279 = vld [vmem:[#allocation2 + $0x458] sm:$0xf]
    %v280 = vld [vmem:[#allocation2 + $0x45c] sm:$0xff]
    %v281 = vld [vmem:[#allocation2 + $0x464] sm:$0xf]
    %v282 = vld [vmem:[#allocation2 + $0x468] sm:$0xff]
    %v283 = vld [vmem:[#allocation2 + $0x470] sm:$0xf]
    %v284 = vld [vmem:[#allocation2 + $0x474] sm:$0xff]
    %v285 = vld [vmem:[#allocation2 + $0x47c] sm:$0xf]
    %v478 = vunpack.c.l.b16 %v94
    %v479 = vunpack.c.h.b16 %v94
    %v480 = vunpack.c.l.b16 %v95
    %v481 = vunpack.c.l.b16 %v96
    %v482 = vunpack.c.h.b16 %v96
    %v483 = vunpack.c.l.b16 %v97
    %v484 = vunpack.c.l.b16 %v98
    %v485 = vunpack.c.h.b16 %v98
    %v486 = vunpack.c.l.b16 %v99
    %v487 = vunpack.c.l.b16 %v100
    %v488 = vunpack.c.h.b16 %v100
    %v489 = vunpack.c.l.b16 %v101
    %v490 = vunpack.c.l.b16 %v102
    %v491 = vunpack.c.h.b16 %v102
    %v492 = vunpack.c.l.b16 %v103
    %v493 = vunpack.c.l.b16 %v104
    %v494 = vunpack.c.h.b16 %v104
    %v495 = vunpack.c.l.b16 %v105
    %v496 = vunpack.c.l.b16 %v106
    %v497 = vunpack.c.h.b16 %v106
    %v498 = vunpack.c.l.b16 %v107
    %v499 = vunpack.c.l.b16 %v108
    %v500 = vunpack.c.h.b16 %v108
    %v501 = vunpack.c.l.b16 %v109
    %v502 = vunpack.c.l.b16 %v110
    %v503 = vunpack.c.h.b16 %v110
    %v504 = vunpack.c.l.b16 %v111
    %v505 = vunpack.c.l.b16 %v112
    %v506 = vunpack.c.h.b16 %v112
    %v507 = vunpack.c.l.b16 %v113
    %v508 = vunpack.c.l.b16 %v114
    %v509 = vunpack.c.h.b16 %v114
    %v510 = vunpack.c.l.b16 %v115
    %v511 = vunpack.c.l.b16 %v116
    %v512 = vunpack.c.h.b16 %v116
    %v513 = vunpack.c.l.b16 %v117
    %v514 = vunpack.c.l.b16 %v118
    %v515 = vunpack.c.h.b16 %v118
    %v516 = vunpack.c.l.b16 %v119
    %v517 = vunpack.c.l.b16 %v120
    %v518 = vunpack.c.h.b16 %v120
    %v519 = vunpack.c.l.b16 %v121
    %v520 = vunpack.c.l.b16 %v122
    %v521 = vunpack.c.h.b16 %v122
    %v522 = vunpack.c.l.b16 %v123
    %v523 = vunpack.c.l.b16 %v124
    %v524 = vunpack.c.h.b16 %v124
    %v525 = vunpack.c.l.b16 %v125
    %v526 = vunpack.c.l.b16 %v126
    %v527 = vunpack.c.h.b16 %v126
    %v528 = vunpack.c.l.b16 %v127
    %v529 = vunpack.c.l.b16 %v128
    %v530 = vunpack.c.h.b16 %v128
    %v531 = vunpack.c.l.b16 %v129
    %v532 = vunpack.c.l.b16 %v130
    %v533 = vunpack.c.h.b16 %v130
    %v534 = vunpack.c.l.b16 %v131
    %v535 = vunpack.c.l.b16 %v132
    %v536 = vunpack.c.h.b16 %v132
    %v537 = vunpack.c.l.b16 %v133
    %v538 = vunpack.c.l.b16 %v134
    %v539 = vunpack.c.h.b16 %v134
    %v540 = vunpack.c.l.b16 %v135
    %v541 = vunpack.c.l.b16 %v136
    %v542 = vunpack.c.h.b16 %v136
    %v543 = vunpack.c.l.b16 %v137
    %v544 = vunpack.c.l.b16 %v138
    %v545 = vunpack.c.h.b16 %v138
    %v546 = vunpack.c.l.b16 %v139
    %v547 = vunpack.c.l.b16 %v140
    %v548 = vunpack.c.h.b16 %v140
    %v549 = vunpack.c.l.b16 %v141
    %v550 = vunpack.c.l.b16 %v142
    %v551 = vunpack.c.h.b16 %v142
    %v552 = vunpack.c.l.b16 %v143
    %v553 = vunpack.c.l.b16 %v144
    %v554 = vunpack.c.h.b16 %v144
    %v555 = vunpack.c.l.b16 %v145
    %v556 = vunpack.c.l.b16 %v146
    %v557 = vunpack.c.h.b16 %v146
    %v558 = vunpack.c.l.b16 %v147
    %v559 = vunpack.c.l.b16 %v148
    %v560 = vunpack.c.h.b16 %v148
    %v561 = vunpack.c.l.b16 %v149
    %v562 = vunpack.c.l.b16 %v150
    %v563 = vunpack.c.h.b16 %v150
    %v564 = vunpack.c.l.b16 %v151
    %v565 = vunpack.c.l.b16 %v152
    %v566 = vunpack.c.h.b16 %v152
    %v567 = vunpack.c.l.b16 %v153
    %v568 = vunpack.c.l.b16 %v154
    %v569 = vunpack.c.h.b16 %v154
    %v570 = vunpack.c.l.b16 %v155
    %v571 = vunpack.c.l.b16 %v156
    %v572 = vunpack.c.h.b16 %v156
    %v573 = vunpack.c.l.b16 %v157
    %v574 = vunpack.c.l.b16 %v158
    %v575 = vunpack.c.h.b16 %v158
    %v576 = vunpack.c.l.b16 %v159
    %v577 = vunpack.c.l.b16 %v160
    %v578 = vunpack.c.h.b16 %v160
    %v579 = vunpack.c.l.b16 %v161
    %v580 = vunpack.c.l.b16 %v162
    %v581 = vunpack.c.h.b16 %v162
    %v582 = vunpack.c.l.b16 %v163
    %v583 = vunpack.c.l.b16 %v164
    %v584 = vunpack.c.h.b16 %v164
    %v585 = vunpack.c.l.b16 %v165
    %v586 = vunpack.c.l.b16 %v166
    %v587 = vunpack.c.h.b16 %v166
    %v588 = vunpack.c.l.b16 %v167
    %v589 = vunpack.c.l.b16 %v168
    %v590 = vunpack.c.h.b16 %v168
    %v591 = vunpack.c.l.b16 %v169
    %v592 = vunpack.c.l.b16 %v170
    %v593 = vunpack.c.h.b16 %v170
    %v594 = vunpack.c.l.b16 %v171
    %v595 = vunpack.c.l.b16 %v172
    %v596 = vunpack.c.h.b16 %v172
    %v597 = vunpack.c.l.b16 %v173
    %v598 = vunpack.c.l.b16 %v174
    %v599 = vunpack.c.h.b16 %v174
    %v600 = vunpack.c.l.b16 %v175
    %v601 = vunpack.c.l.b16 %v176
    %v602 = vunpack.c.h.b16 %v176
    %v603 = vunpack.c.l.b16 %v177
    %v604 = vunpack.c.l.b16 %v178
    %v605 = vunpack.c.h.b16 %v178
    %v606 = vunpack.c.l.b16 %v179
    %v607 = vunpack.c.l.b16 %v180
    %v608 = vunpack.c.h.b16 %v180
    %v609 = vunpack.c.l.b16 %v181
    %v610 = vunpack.c.l.b16 %v182
    %v611 = vunpack.c.h.b16 %v182
    %v612 = vunpack.c.l.b16 %v183
    %v613 = vunpack.c.l.b16 %v184
    %v614 = vunpack.c.h.b16 %v184
    %v615 = vunpack.c.l.b16 %v185
    %v616 = vunpack.c.l.b16 %v186
    %v617 = vunpack.c.h.b16 %v186
    %v618 = vunpack.c.l.b16 %v187
    %v619 = vunpack.c.l.b16 %v188
    %v620 = vunpack.c.h.b16 %v188
    %v621 = vunpack.c.l.b16 %v189
    %v622 = vunpack.c.l.b16 %v190
    %v623 = vunpack.c.h.b16 %v190
    %v624 = vunpack.c.l.b16 %v191
    %v625 = vunpack.c.l.b16 %v192
    %v626 = vunpack.c.h.b16 %v192
    %v627 = vunpack.c.l.b16 %v193
    %v628 = vunpack.c.l.b16 %v194
    %v629 = vunpack.c.h.b16 %v194
    %v630 = vunpack.c.l.b16 %v195
    %v631 = vunpack.c.l.b16 %v196
    %v632 = vunpack.c.h.b16 %v196
    %v633 = vunpack.c.l.b16 %v197
    %v634 = vunpack.c.l.b16 %v198
    %v635 = vunpack.c.h.b16 %v198
    %v636 = vunpack.c.l.b16 %v199
    %v637 = vunpack.c.l.b16 %v200
    %v638 = vunpack.c.h.b16 %v200
    %v639 = vunpack.c.l.b16 %v201
    %v640 = vunpack.c.l.b16 %v202
    %v641 = vunpack.c.h.b16 %v202
    %v642 = vunpack.c.l.b16 %v203
    %v643 = vunpack.c.l.b16 %v204
    %v644 = vunpack.c.h.b16 %v204
    %v645 = vunpack.c.l.b16 %v205
    %v646 = vunpack.c.l.b16 %v206
    %v647 = vunpack.c.h.b16 %v206
    %v648 = vunpack.c.l.b16 %v207
    %v649 = vunpack.c.l.b16 %v208
    %v650 = vunpack.c.h.b16 %v208
    %v651 = vunpack.c.l.b16 %v209
    %v652 = vunpack.c.l.b16 %v210
    %v653 = vunpack.c.h.b16 %v210
    %v654 = vunpack.c.l.b16 %v211
    %v655 = vunpack.c.l.b16 %v212
    %v656 = vunpack.c.h.b16 %v212
    %v657 = vunpack.c.l.b16 %v213
    %v658 = vunpack.c.l.b16 %v214
    %v659 = vunpack.c.h.b16 %v214
    %v660 = vunpack.c.l.b16 %v215
    %v661 = vunpack.c.l.b16 %v216
    %v662 = vunpack.c.h.b16 %v216
    %v663 = vunpack.c.l.b16 %v217
    %v664 = vunpack.c.l.b16 %v218
    %v665 = vunpack.c.h.b16 %v218
    %v666 = vunpack.c.l.b16 %v219
    %v667 = vunpack.c.l.b16 %v220
    %v668 = vunpack.c.h.b16 %v220
    %v669 = vunpack.c.l.b16 %v221
    %v670 = vunpack.c.l.b16 %v222
    %v671 = vunpack.c.h.b16 %v222
    %v672 = vunpack.c.l.b16 %v223
    %v673 = vunpack.c.l.b16 %v224
    %v674 = vunpack.c.h.b16 %v224
    %v675 = vunpack.c.l.b16 %v225
    %v676 = vunpack.c.l.b16 %v226
    %v677 = vunpack.c.h.b16 %v226
    %v678 = vunpack.c.l.b16 %v227
    %v679 = vunpack.c.l.b16 %v228
    %v680 = vunpack.c.h.b16 %v228
    %v681 = vunpack.c.l.b16 %v229
    %v682 = vunpack.c.l.b16 %v230
    %v683 = vunpack.c.h.b16 %v230
    %v684 = vunpack.c.l.b16 %v231
    %v685 = vunpack.c.l.b16 %v232
    %v686 = vunpack.c.h.b16 %v232
    %v687 = vunpack.c.l.b16 %v233
    %v688 = vunpack.c.l.b16 %v234
    %v689 = vunpack.c.h.b16 %v234
    %v690 = vunpack.c.l.b16 %v235
    %v691 = vunpack.c.l.b16 %v236
    %v692 = vunpack.c.h.b16 %v236
    %v693 = vunpack.c.l.b16 %v237
    %v694 = vunpack.c.l.b16 %v238
    %v695 = vunpack.c.h.b16 %v238
    %v696 = vunpack.c.l.b16 %v239
    %v697 = vunpack.c.l.b16 %v240
    %v698 = vunpack.c.h.b16 %v240
    %v699 = vunpack.c.l.b16 %v241
    %v700 = vunpack.c.l.b16 %v242
    %v701 = vunpack.c.h.b16 %v242
    %v702 = vunpack.c.l.b16 %v243
    %v703 = vunpack.c.l.b16 %v244
    %v704 = vunpack.c.h.b16 %v244
    %v705 = vunpack.c.l.b16 %v245
    %v706 = vunpack.c.l.b16 %v246
    %v707 = vunpack.c.h.b16 %v246
    %v708 = vunpack.c.l.b16 %v247
    %v709 = vunpack.c.l.b16 %v248
    %v710 = vunpack.c.h.b16 %v248
    %v711 = vunpack.c.l.b16 %v249
    %v712 = vunpack.c.l.b16 %v250
    %v713 = vunpack.c.h.b16 %v250
    %v714 = vunpack.c.l.b16 %v251
    %v715 = vunpack.c.l.b16 %v252
    %v716 = vunpack.c.h.b16 %v252
    %v717 = vunpack.c.l.b16 %v253
    %v718 = vunpack.c.l.b16 %v254
    %v719 = vunpack.c.h.b16 %v254
    %v720 = vunpack.c.l.b16 %v255
    %v721 = vunpack.c.l.b16 %v256
    %v722 = vunpack.c.h.b16 %v256
    %v723 = vunpack.c.l.b16 %v257
    %v724 = vunpack.c.l.b16 %v258
    %v725 = vunpack.c.h.b16 %v258
    %v726 = vunpack.c.l.b16 %v259
    %v727 = vunpack.c.l.b16 %v260
    %v728 = vunpack.c.h.b16 %v260
    %v729 = vunpack.c.l.b16 %v261
    %v730 = vunpack.c.l.b16 %v262
    %v731 = vunpack.c.h.b16 %v262
    %v732 = vunpack.c.l.b16 %v263
    %v733 = vunpack.c.l.b16 %v264
    %v734 = vunpack.c.h.b16 %v264
    %v735 = vunpack.c.l.b16 %v265
    %v736 = vunpack.c.l.b16 %v266
    %v737 = vunpack.c.h.b16 %v266
    %v738 = vunpack.c.l.b16 %v267
    %v739 = vunpack.c.l.b16 %v268
    %v740 = vunpack.c.h.b16 %v268
    %v741 = vunpack.c.l.b16 %v269
    %v742 = vunpack.c.l.b16 %v270
    %v743 = vunpack.c.h.b16 %v270
    %v744 = vunpack.c.l.b16 %v271
    %v745 = vunpack.c.l.b16 %v272
    %v746 = vunpack.c.h.b16 %v272
    %v747 = vunpack.c.l.b16 %v273
    %v748 = vunpack.c.l.b16 %v274
    %v749 = vunpack.c.h.b16 %v274
    %v750 = vunpack.c.l.b16 %v275
    %v751 = vunpack.c.l.b16 %v276
    %v752 = vunpack.c.h.b16 %v276
    %v753 = vunpack.c.l.b16 %v277
    %v754 = vunpack.c.l.b16 %v278
    %v755 = vunpack.c.h.b16 %v278
    %v756 = vunpack.c.l.b16 %v279
    %v757 = vunpack.c.l.b16 %v280
    %v758 = vunpack.c.h.b16 %v280
    %v759 = vunpack.c.l.b16 %v281
    %v760 = vunpack.c.l.b16 %v282
    %v761 = vunpack.c.h.b16 %v282
    %v762 = vunpack.c.l.b16 %v283
    %v763 = vunpack.c.l.b16 %v284
    %v764 = vunpack.c.h.b16 %v284
    %v765 = vunpack.c.l.b16 %v285
    %v766 = vpack.c.b16 %v481, %v478
    %v767 = vpack.c.b16 %v482, %v479
    %v768 = vpack.c.b16 %v483, %v480
    %v769 = vpack.c.b16 %v487, %v484
    %v770 = vpack.c.b16 %v488, %v485
    %v771 = vpack.c.b16 %v489, %v486
    %v772 = vpack.c.b16 %v493, %v490
    %v773 = vpack.c.b16 %v494, %v491
    %v774 = vpack.c.b16 %v495, %v492
    %v775 = vpack.c.b16 %v499, %v496
    %v776 = vpack.c.b16 %v500, %v497
    %v777 = vpack.c.b16 %v501, %v498
    %v778 = vpack.c.b16 %v505, %v502
    %v779 = vpack.c.b16 %v506, %v503
    %v780 = vpack.c.b16 %v507, %v504
    %v781 = vpack.c.b16 %v511, %v508
    %v782 = vpack.c.b16 %v512, %v509
    %v783 = vpack.c.b16 %v513, %v510
    %v784 = vpack.c.b16 %v517, %v514
    %v785 = vpack.c.b16 %v518, %v515
    %v786 = vpack.c.b16 %v519, %v516
    %v787 = vpack.c.b16 %v523, %v520
    %v788 = vpack.c.b16 %v524, %v521
    %v789 = vpack.c.b16 %v525, %v522
    %v790 = vpack.c.b16 %v529, %v526
    %v791 = vpack.c.b16 %v530, %v527
    %v792 = vpack.c.b16 %v531, %v528
    %v793 = vpack.c.b16 %v535, %v532
    %v794 = vpack.c.b16 %v536, %v533
    %v795 = vpack.c.b16 %v537, %v534
    %v796 = vpack.c.b16 %v541, %v538
    %v797 = vpack.c.b16 %v542, %v539
    %v798 = vpack.c.b16 %v543, %v540
    %v799 = vpack.c.b16 %v547, %v544
    %v800 = vpack.c.b16 %v548, %v545
    %v801 = vpack.c.b16 %v549, %v546
    %v802 = vpack.c.b16 %v553, %v550
    %v803 = vpack.c.b16 %v554, %v551
    %v804 = vpack.c.b16 %v555, %v552
    %v805 = vpack.c.b16 %v559, %v556
    %v806 = vpack.c.b16 %v560, %v557
    %v807 = vpack.c.b16 %v561, %v558
    %v808 = vpack.c.b16 %v565, %v562
    %v809 = vpack.c.b16 %v566, %v563
    %v810 = vpack.c.b16 %v567, %v564
    %v811 = vpack.c.b16 %v571, %v568
    %v812 = vpack.c.b16 %v572, %v569
    %v813 = vpack.c.b16 %v573, %v570
    %v814 = vpack.c.b16 %v577, %v574
    %v815 = vpack.c.b16 %v578, %v575
    %v816 = vpack.c.b16 %v579, %v576
    %v817 = vpack.c.b16 %v583, %v580
    %v818 = vpack.c.b16 %v584, %v581
    %v819 = vpack.c.b16 %v585, %v582
    %v820 = vpack.c.b16 %v589, %v586
    %v821 = vpack.c.b16 %v590, %v587
    %v822 = vpack.c.b16 %v591, %v588
    %v823 = vpack.c.b16 %v595, %v592
    %v824 = vpack.c.b16 %v596, %v593
    %v825 = vpack.c.b16 %v597, %v594
    %v826 = vpack.c.b16 %v601, %v598
    %v827 = vpack.c.b16 %v602, %v599
    %v828 = vpack.c.b16 %v603, %v600
    %v829 = vpack.c.b16 %v607, %v604
    %v830 = vpack.c.b16 %v608, %v605
    %v831 = vpack.c.b16 %v609, %v606
    %v832 = vpack.c.b16 %v613, %v610
    %v833 = vpack.c.b16 %v614, %v611
    %v834 = vpack.c.b16 %v615, %v612
    %v835 = vpack.c.b16 %v619, %v616
    %v836 = vpack.c.b16 %v620, %v617
    %v837 = vpack.c.b16 %v621, %v618
    %v838 = vpack.c.b16 %v625, %v622
    %v839 = vpack.c.b16 %v626, %v623
    %v840 = vpack.c.b16 %v627, %v624
    %v841 = vpack.c.b16 %v631, %v628
    %v842 = vpack.c.b16 %v632, %v629
    %v843 = vpack.c.b16 %v633, %v630
    %v844 = vpack.c.b16 %v637, %v634
    %v845 = vpack.c.b16 %v638, %v635
    %v846 = vpack.c.b16 %v639, %v636
    %v847 = vpack.c.b16 %v643, %v640
    %v848 = vpack.c.b16 %v644, %v641
    %v849 = vpack.c.b16 %v645, %v642
    %v850 = vpack.c.b16 %v649, %v646
    %v851 = vpack.c.b16 %v650, %v647
    %v852 = vpack.c.b16 %v651, %v648
    %v853 = vpack.c.b16 %v655, %v652
    %v854 = vpack.c.b16 %v656, %v653
    %v855 = vpack.c.b16 %v657, %v654
    %v856 = vpack.c.b16 %v661, %v658
    %v857 = vpack.c.b16 %v662, %v659
    %v858 = vpack.c.b16 %v663, %v660
    %v859 = vpack.c.b16 %v667, %v664
    %v860 = vpack.c.b16 %v668, %v665
    %v861 = vpack.c.b16 %v669, %v666
    %v862 = vpack.c.b16 %v673, %v670
    %v863 = vpack.c.b16 %v674, %v671
    %v864 = vpack.c.b16 %v675, %v672
    %v865 = vpack.c.b16 %v679, %v676
    %v866 = vpack.c.b16 %v680, %v677
    %v867 = vpack.c.b16 %v681, %v678
    %v868 = vpack.c.b16 %v685, %v682
    %v869 = vpack.c.b16 %v686, %v683
    %v870 = vpack.c.b16 %v687, %v684
    %v871 = vpack.c.b16 %v691, %v688
    %v872 = vpack.c.b16 %v692, %v689
    %v873 = vpack.c.b16 %v693, %v690
    %v874 = vpack.c.b16 %v697, %v694
    %v875 = vpack.c.b16 %v698, %v695
    %v876 = vpack.c.b16 %v699, %v696
    %v877 = vpack.c.b16 %v703, %v700
    %v878 = vpack.c.b16 %v704, %v701
    %v879 = vpack.c.b16 %v705, %v702
    %v880 = vpack.c.b16 %v709, %v706
    %v881 = vpack.c.b16 %v710, %v707
    %v882 = vpack.c.b16 %v711, %v708
    %v883 = vpack.c.b16 %v715, %v712
    %v884 = vpack.c.b16 %v716, %v713
    %v885 = vpack.c.b16 %v717, %v714
    %v886 = vpack.c.b16 %v721, %v718
    %v887 = vpack.c.b16 %v722, %v719
    %v888 = vpack.c.b16 %v723, %v720
    %v889 = vpack.c.b16 %v727, %v724
    %v890 = vpack.c.b16 %v728, %v725
    %v891 = vpack.c.b16 %v729, %v726
    %v892 = vpack.c.b16 %v733, %v730
    %v893 = vpack.c.b16 %v734, %v731
    %v894 = vpack.c.b16 %v735, %v732
    %v895 = vpack.c.b16 %v739, %v736
    %v896 = vpack.c.b16 %v740, %v737
    %v897 = vpack.c.b16 %v741, %v738
    %v898 = vpack.c.b16 %v745, %v742
    %v899 = vpack.c.b16 %v746, %v743
    %v900 = vpack.c.b16 %v747, %v744
    %v901 = vpack.c.b16 %v751, %v748
    %v902 = vpack.c.b16 %v752, %v749
    %v903 = vpack.c.b16 %v753, %v750
    %v904 = vpack.c.b16 %v757, %v754
    %v905 = vpack.c.b16 %v758, %v755
    %v906 = vpack.c.b16 %v759, %v756
    %v907 = vpack.c.b16 %v763, %v760
    %v908 = vpack.c.b16 %v764, %v761
    %v909 = vpack.c.b16 %v765, %v762
    %1054 = vmatprep.subr.bf16.mxu0 %v767
    %1055 = vmatpush1.bf16.msra.mxu0 %v766
    %1056 = vmatprep.subr.bf16.mxu0 %v770
    %1057 = vmatpush1.bf16.msra.mxu0 %v769
    %1058 = vmatprep.subr.bf16.mxu0 %v773
    %1059 = vmatpush1.bf16.msra.mxu0 %v772
    %1060 = vmatprep.subr.bf16.mxu0 %v776
    %1061 = vmatpush1.bf16.msra.mxu0 %v775
    %1062 = vmatprep.subr.bf16.mxu0 %v779
    %1063 = vmatpush1.bf16.msra.mxu0 %v778
    %1064 = vmatprep.subr.bf16.mxu0 %v782
    %1065 = vmatpush1.bf16.msra.mxu0 %v781
    %1066 = vmatprep.subr.bf16.mxu0 %v785
    %1067 = vmatpush1.bf16.msra.mxu0 %v784
    %1068 = vmatprep.subr.bf16.mxu0 %v788
    %1069 = vmatpush1.bf16.msra.mxu0 %v787
    %1070 = vmatprep.subr.bf16.mxu0 %v791
    %1071 = vmatpush1.bf16.msra.mxu0 %v790
    %1072 = vmatprep.subr.bf16.mxu0 %v794
    %1073 = vmatpush1.bf16.msra.mxu0 %v793
    %1074 = vmatprep.subr.bf16.mxu0 %v797
    %1075 = vmatpush1.bf16.msra.mxu0 %v796
    %1076 = vmatprep.subr.bf16.mxu0 %v800
    %1077 = vmatpush1.bf16.msra.mxu0 %v799
    %1078 = vmatprep.subr.bf16.mxu0 %v803
    %1079 = vmatpush1.bf16.msra.mxu0 %v802
    %1080 = vmatprep.subr.bf16.mxu0 %v806
    %1081 = vmatpush1.bf16.msra.mxu0 %v805
    %1082 = vmatprep.subr.bf16.mxu0 %v809
    %1083 = vmatpush1.bf16.msra.mxu0 %v808
    %1084 = vmatprep.subr.bf16.mxu0 %v812
    %1085 = vmatpush1.bf16.msra.mxu0 %v811
    %1086 = vmatprep.mubr.bf16.mxu0 %v89
    %1087 = vmatmul.mubr.bf16.gmra.mrb[0].mxu0 %v88
    %v1088 = vpop.f32.mrb[0].mxu0
    %v1089 = vadd.f32 0.0, %v1088
    %v1090 = vpop.f32.mrb[0].mxu0
    %v1091 = vadd.f32 0.0, %v1090
    %v1092 = vpop.f32.mrb[0].mxu0
    %v1093 = vpop.f32.mrb[0].mxu0
    %1094 = vdwg.mxu0
    %1095 = vmatprep.subr.bf16.mxu0 %v815
    %1096 = vmatpush1.bf16.msra.mxu0 %v814
    %1097 = vmatprep.subr.bf16.mxu0 %v818
    %1098 = vmatpush1.bf16.msra.mxu0 %v817
    %1099 = vmatprep.subr.bf16.mxu0 %v821
    %1100 = vmatpush1.bf16.msra.mxu0 %v820
    %1101 = vmatprep.subr.bf16.mxu0 %v824
    %1102 = vmatpush1.bf16.msra.mxu0 %v823
    %1103 = vmatprep.subr.bf16.mxu0 %v827
    %1104 = vmatpush1.bf16.msra.mxu0 %v826
    %1105 = vmatprep.subr.bf16.mxu0 %v830
    %1106 = vmatpush1.bf16.msra.mxu0 %v829
    %1107 = vmatprep.subr.bf16.mxu0 %v833
    %1108 = vmatpush1.bf16.msra.mxu0 %v832
    %1109 = vmatprep.subr.bf16.mxu0 %v836
    %1110 = vmatpush1.bf16.msra.mxu0 %v835
    %1111 = vmatprep.subr.bf16.mxu0 %v839
    %1112 = vmatpush1.bf16.msra.mxu0 %v838
    %1113 = vmatprep.subr.bf16.mxu0 %v842
    %1114 = vmatpush1.bf16.msra.mxu0 %v841
    %1115 = vmatprep.subr.bf16.mxu0 %v845
    %1116 = vmatpush1.bf16.msra.mxu0 %v844
    %1117 = vmatprep.subr.bf16.mxu0 %v848
    %1118 = vmatpush1.bf16.msra.mxu0 %v847
    %1119 = vmatprep.subr.bf16.mxu0 %v851
    %1120 = vmatpush1.bf16.msra.mxu0 %v850
    %1121 = vmatprep.subr.bf16.mxu0 %v854
    %1122 = vmatpush1.bf16.msra.mxu0 %v853
    %1123 = vmatprep.subr.bf16.mxu0 %v857
    %1124 = vmatpush1.bf16.msra.mxu0 %v856
    %1125 = vmatprep.subr.bf16.mxu0 %v860
    %1126 = vmatpush1.bf16.msra.mxu0 %v859
    %1127 = vmatprep.mubr.bf16.mxu0 %v91
    %1128 = vmatmul.mubr.bf16.gmra.mrb[0].mxu0 %v90
    %v1129 = vpop.f32.mrb[0].mxu0
    %v1130 = vadd.f32 %v1089, %v1129
    %v1131 = vpop.f32.mrb[0].mxu0
    %v1132 = vadd.f32 %v1091, %v1131
    %v1133 = vpop.f32.mrb[0].mxu0
    %v1134 = vpop.f32.mrb[0].mxu0
    %1135 = vdwg.mxu0
    %1136 = vmatprep.subr.bf16.mxu0 %v863
    %1137 = vmatpush1.bf16.msra.mxu0 %v862
    %1138 = vmatprep.subr.bf16.mxu0 %v866
    %1139 = vmatpush1.bf16.msra.mxu0 %v865
    %1140 = vmatprep.subr.bf16.mxu0 %v869
    %1141 = vmatpush1.bf16.msra.mxu0 %v868
    %1142 = vmatprep.subr.bf16.mxu0 %v872
    %1143 = vmatpush1.bf16.msra.mxu0 %v871
    %1144 = vmatprep.subr.bf16.mxu0 %v875
    %1145 = vmatpush1.bf16.msra.mxu0 %v874
    %1146 = vmatprep.subr.bf16.mxu0 %v878
    %1147 = vmatpush1.bf16.msra.mxu0 %v877
    %1148 = vmatprep.subr.bf16.mxu0 %v881
    %1149 = vmatpush1.bf16.msra.mxu0 %v880
    %1150 = vmatprep.subr.bf16.mxu0 %v884
    %1151 = vmatpush1.bf16.msra.mxu0 %v883
    %1152 = vmatprep.subr.bf16.mxu0 %v887
    %1153 = vmatpush1.bf16.msra.mxu0 %v886
    %1154 = vmatprep.subr.bf16.mxu0 %v890
    %1155 = vmatpush1.bf16.msra.mxu0 %v889
    %1156 = vmatprep.subr.bf16.mxu0 %v893
    %1157 = vmatpush1.bf16.msra.mxu0 %v892
    %1158 = vmatprep.subr.bf16.mxu0 %v896
    %1159 = vmatpush1.bf16.msra.mxu0 %v895
    %1160 = vmatprep.subr.bf16.mxu0 %v899
    %1161 = vmatpush1.bf16.msra.mxu0 %v898
    %1162 = vmatprep.subr.bf16.mxu0 %v902
    %1163 = vmatpush1.bf16.msra.mxu0 %v901
    %1164 = vmatprep.subr.bf16.mxu0 %v905
    %1165 = vmatpush1.bf16.msra.mxu0 %v904
    %1166 = vmatprep.subr.bf16.mxu0 %v908
    %1167 = vmatpush1.bf16.msra.mxu0 %v907
    %1168 = vmatprep.mubr.bf16.mxu0 %v93
    %1169 = vmatmul.mubr.bf16.gmra.mrb[0].mxu0 %v92
    %v1170 = vpop.f32.mrb[0].mxu0
    %v1171 = vadd.f32 %v1130, %v1170
    %v1172 = vpop.f32.mrb[0].mxu0
    %v1173 = vadd.f32 %v1132, %v1172
    %v1174 = vpop.f32.mrb[0].mxu0
    %v1175 = vpop.f32.mrb[0].mxu0
    %1176 = vdwg.mxu0
    %1177 = vmatprep.subr.bf16.mxu0 0
    %1178 = vmatpush1.bf16.msra.mxu0 %v768
    %1179 = vmatprep.subr.bf16.mxu0 0
    %1180 = vmatpush1.bf16.msra.mxu0 %v771
    %1181 = vmatprep.subr.bf16.mxu0 0
    %1182 = vmatpush1.bf16.msra.mxu0 %v774
    %1183 = vmatprep.subr.bf16.mxu0 0
    %1184 = vmatpush1.bf16.msra.mxu0 %v777
    %1185 = vmatprep.subr.bf16.mxu0 0
    %1186 = vmatpush1.bf16.msra.mxu0 %v780
    %1187 = vmatprep.subr.bf16.mxu0 0
    %1188 = vmatpush1.bf16.msra.mxu0 %v783
    %1189 = vmatprep.subr.bf16.mxu0 0
    %1190 = vmatpush1.bf16.msra.mxu0 %v786
    %1191 = vmatprep.subr.bf16.mxu0 0
    %1192 = vmatpush1.bf16.msra.mxu0 %v789
    %1193 = vmatprep.subr.bf16.mxu0 0
    %1194 = vmatpush1.bf16.msra.mxu0 %v792
    %1195 = vmatprep.subr.bf16.mxu0 0
    %1196 = vmatpush1.bf16.msra.mxu0 %v795
    %1197 = vmatprep.subr.bf16.mxu0 0
    %1198 = vmatpush1.bf16.msra.mxu0 %v798
    %1199 = vmatprep.subr.bf16.mxu0 0
    %1200 = vmatpush1.bf16.msra.mxu0 %v801
    %1201 = vmatprep.subr.bf16.mxu0 0
    %1202 = vmatpush1.bf16.msra.mxu0 %v804
    %1203 = vmatprep.subr.bf16.mxu0 0
    %1204 = vmatpush1.bf16.msra.mxu0 %v807
    %1205 = vmatprep.subr.bf16.mxu0 0
    %1206 = vmatpush1.bf16.msra.mxu0 %v810
    %1207 = vmatprep.subr.bf16.mxu0 0
    %1208 = vmatpush1.bf16.msra.mxu0 %v813
    %1209 = vmatprep.mubr.bf16.mxu0 %v89
    %1210 = vmatmul.mubr.bf16.gmra.mrb[0].mxu0 %v88
    %v1211 = vpop.f32.mrb[0].mxu0
    %v1212 = vadd.f32 0.0, %v1211
    %v1213 = vpop.f32.mrb[0].mxu0
    %v1214 = vpop.f32.mrb[0].mxu0
    %v1215 = vpop.f32.mrb[0].mxu0
    %1216 = vdwg.mxu0
    %1217 = vmatprep.subr.bf16.mxu0 0
    %1218 = vmatpush1.bf16.msra.mxu0 %v816
    %1219 = vmatprep.subr.bf16.mxu0 0
    %1220 = vmatpush1.bf16.msra.mxu0 %v819
    %1221 = vmatprep.subr.bf16.mxu0 0
    %1222 = vmatpush1.bf16.msra.mxu0 %v822
    %1223 = vmatprep.subr.bf16.mxu0 0
    %1224 = vmatpush1.bf16.msra.mxu0 %v825
    %1225 = vmatprep.subr.bf16.mxu0 0
    %1226 = vmatpush1.bf16.msra.mxu0 %v828
    %1227 = vmatprep.subr.bf16.mxu0 0
    %1228 = vmatpush1.bf16.msra.mxu0 %v831
    %1229 = vmatprep.subr.bf16.mxu0 0
    %1230 = vmatpush1.bf16.msra.mxu0 %v834
    %1231 = vmatprep.subr.bf16.mxu0 0
    %1232 = vmatpush1.bf16.msra.mxu0 %v837
    %1233 = vmatprep.subr.bf16.mxu0 0
    %1234 = vmatpush1.bf16.msra.mxu0 %v840
    %1235 = vmatprep.subr.bf16.mxu0 0
    %1236 = vmatpush1.bf16.msra.mxu0 %v843
    %1237 = vmatprep.subr.bf16.mxu0 0
    %1238 = vmatpush1.bf16.msra.mxu0 %v846
    %1239 = vmatprep.subr.bf16.mxu0 0
    %1240 = vmatpush1.bf16.msra.mxu0 %v849
    %1241 = vmatprep.subr.bf16.mxu0 0
    %1242 = vmatpush1.bf16.msra.mxu0 %v852
    %1243 = vmatprep.subr.bf16.mxu0 0
    %1244 = vmatpush1.bf16.msra.mxu0 %v855
    %1245 = vmatprep.subr.bf16.mxu0 0
    %1246 = vmatpush1.bf16.msra.mxu0 %v858
    %1247 = vmatprep.subr.bf16.mxu0 0
    %1248 = vmatpush1.bf16.msra.mxu0 %v861
    %1249 = vmatprep.mubr.bf16.mxu0 %v91
    %1250 = vmatmul.mubr.bf16.gmra.mrb[0].mxu0 %v90
    %v1251 = vpop.f32.mrb[0].mxu0
    %v1252 = vadd.f32 %v1212, %v1251
    %v1253 = vpop.f32.mrb[0].mxu0
    %v1254 = vpop.f32.mrb[0].mxu0
    %v1255 = vpop.f32.mrb[0].mxu0
    %1256 = vdwg.mxu0
    %1257 = vmatprep.subr.bf16.mxu0 0
    %1258 = vmatpush1.bf16.msra.mxu0 %v864
    %1259 = vmatprep.subr.bf16.mxu0 0
    %1260 = vmatpush1.bf16.msra.mxu0 %v867
    %1261 = vmatprep.subr.bf16.mxu0 0
    %1262 = vmatpush1.bf16.msra.mxu0 %v870
    %1263 = vmatprep.subr.bf16.mxu0 0
    %1264 = vmatpush1.bf16.msra.mxu0 %v873
    %1265 = vmatprep.subr.bf16.mxu0 0
    %1266 = vmatpush1.bf16.msra.mxu0 %v876
    %1267 = vmatprep.subr.bf16.mxu0 0
    %1268 = vmatpush1.bf16.msra.mxu0 %v879
    %1269 = vmatprep.subr.bf16.mxu0 0
    %1270 = vmatpush1.bf16.msra.mxu0 %v882
    %1271 = vmatprep.subr.bf16.mxu0 0
    %1272 = vmatpush1.bf16.msra.mxu0 %v885
    %1273 = vmatprep.subr.bf16.mxu0 0
    %1274 = vmatpush1.bf16.msra.mxu0 %v888
    %1275 = vmatprep.subr.bf16.mxu0 0
    %1276 = vmatpush1.bf16.msra.mxu0 %v891
    %1277 = vmatprep.subr.bf16.mxu0 0
    %1278 = vmatpush1.bf16.msra.mxu0 %v894
    %1279 = vmatprep.subr.bf16.mxu0 0
    %1280 = vmatpush1.bf16.msra.mxu0 %v897
    %1281 = vmatprep.subr.bf16.mxu0 0
    %1282 = vmatpush1.bf16.msra.mxu0 %v900
    %1283 = vmatprep.subr.bf16.mxu0 0
    %1284 = vmatpush1.bf16.msra.mxu0 %v903
    %1285 = vmatprep.subr.bf16.mxu0 0
    %1286 = vmatpush1.bf16.msra.mxu0 %v906
    %1287 = vmatprep.subr.bf16.mxu0 0
    %1288 = vmatpush1.bf16.msra.mxu0 %v909
    %1289 = vmatprep.mubr.bf16.mxu0 %v93
    %1290 = vmatmul.mubr.bf16.gmra.mrb[0].mxu0 %v92
    %v1291 = vpop.f32.mrb[0].mxu0
    %v1292 = vadd.f32 %v1252, %v1291
    %v1293 = vpop.f32.mrb[0].mxu0
    %v1294 = vpop.f32.mrb[0].mxu0
    %v1295 = vpop.f32.mrb[0].mxu0
    %1296 = vdwg.mxu0
    %vm1297 = vcmask 1041408
    %v1298 = vsel %vm1297, %v1171, 0.0
    %v1299 = vrot.slane %v1298, 4
    %v1300 = vadd.f32 %v1298, %v1299
    %v1301 = vrot.slane %v1300, 2
    %v1302 = vadd.f32 %v1300, %v1301
    %v1303 = vrot.slane %v1302, 1
    %v1304 = vadd.f32 %v1302, %v1303
    %v1305 = vsel %vm1297, %v1173, 0.0
    %v1306 = vrot.slane %v1305, 4
    %v1307 = vadd.f32 %v1305, %v1306
    %v1308 = vrot.slane %v1307, 2
    %v1309 = vadd.f32 %v1307, %v1308
    %v1310 = vrot.slane %v1309, 1
    %v1311 = vadd.f32 %v1309, %v1310
    %v1312 = vsel %vm1297, %v1292, 0.0
    %v1313 = vrot.slane %v1312, 4
    %v1314 = vadd.f32 %v1312, %v1313
    %v1315 = vrot.slane %v1314, 2
    %v1316 = vadd.f32 %v1314, %v1315
    %v1317 = vrot.slane %v1316, 1
    %v1318 = vadd.f32 %v1316, %v1317
    %v1319 = vrcp.pop 2.0
    %v1320 = vmul.f32 %v1304, %v1319
    %v1321 = vmul.f32 %v1311, %v1319
    %v1322 = vmul.f32 %v1318, %v1319
    %v1323 = vsub.f32 %v1171, %v1320
    %v1324 = vsub.f32 %v1173, %v1321
    %v1325 = vsub.f32 %v1292, %v1322
    %v1326 = vmul.f32 %v1323, %v1323
    %v1327 = vmul.f32 %v1324, %v1324
    %v1328 = vmul.f32 %v1325, %v1325
    %v1329 = vsel %vm1297, %v1326, 0.0
    %v1330 = vrot.slane %v1329, 4
    %v1331 = vadd.f32 %v1329, %v1330
    %v1332 = vrot.slane %v1331, 2
    %v1333 = vadd.f32 %v1331, %v1332
    %v1334 = vrot.slane %v1333, 1
    %v1335 = vadd.f32 %v1333, %v1334
    %v1336 = vsel %vm1297, %v1327, 0.0
    %v1337 = vrot.slane %v1336, 4
    %v1338 = vadd.f32 %v1336, %v1337
    %v1339 = vrot.slane %v1338, 2
    %v1340 = vadd.f32 %v1338, %v1339
    %v1341 = vrot.slane %v1340, 1
    %v1342 = vadd.f32 %v1340, %v1341
    %v1343 = vsel %vm1297, %v1328, 0.0
    %v1344 = vrot.slane %v1343, 4
    %v1345 = vadd.f32 %v1343, %v1344
    %v1346 = vrot.slane %v1345, 2
    %v1347 = vadd.f32 %v1345, %v1346
    %v1348 = vrot.slane %v1347, 1
    %v1349 = vadd.f32 %v1347, %v1348
    %v1350 = vmul.f32 %v1335, %v1319
    %v1351 = vmul.f32 %v1342, %v1319
    %v1352 = vmul.f32 %v1349, %v1319
    %v1353 = vld [vmem:[%s2] sm:$0x7]
    %v1354 = vadd.f32 %v1350, 1e-05
    %v1355 = vadd.f32 %v1351, 1e-05
    %v1356 = vadd.f32 %v1352, 1e-05
    %v1357 = vrsqrt.pop %v1354
    %v1358 = vrsqrt.pop %v1355
    %v1359 = vrsqrt.pop %v1356
    %v1363 = vcombine.low %v1357, %v1358
    %v1365 = vunpack.c.l.s4 1966171168
    %v1366 = vunpack.c.0.s8 %v1365
    %v1367 = vlaneseq
    %v1368 = vshrl.u32 %v1367, 7
    %v1369 = vsub.s32 %v1366, %v1368
    %v1370 = vrot.slane %v1363, %v1369
    %v1372 = vunpack.c.l.s4 1966171168
    %v1373 = vunpack.c.0.s8 %v1372
    %v1374 = vlaneseq
    %v1375 = vshrl.u32 %v1374, 7
    %v1376 = vsub.s32 %v1373, %v1375
    %v1377 = vrot.slane %v1359, %v1376
    %v1378 = vcombine.low %v1370, %v1377
    %v1380 = vunpack.c.l.s4 1966171168
    %v1381 = vunpack.c.0.s8 %v1380
    %v1382 = vlaneseq
    %v1383 = vshrl.u32 %v1382, 7
    %v1384 = vsub.s32 %v1381, %v1383
    %v1385 = vrot.slane %v1378, %v1384
    %v1387 = vmul.f32 %v1353, %v1385
    %v1388 = vld [vmem:[%s3] sm:$0x7]
    %v1390 = vlaneseq
    %v1391 = vshrl.u32 %v1390, 7
    %v1392 = vsub.s32 0, %v1391
    %v1393 = vrot.slane %v1387, %v1392
    %v1394 = vlaneseq
    %v1395 = vshrl.u32 %v1394, 7
    %v1396 = vsub.s32 1, %v1395
    %v1397 = vrot.slane %v1387, %v1396
    %v1398 = vlaneseq
    %v1399 = vshrl.u32 %v1398, 7
    %v1400 = vsub.s32 2, %v1399
    %v1401 = vrot.slane %v1387, %v1400
    %v1405 = vmul.f32 %v1320, %v1393
    %v1406 = vmul.f32 %v1321, %v1397
    %v1407 = vmul.f32 %v1322, %v1401
    %v1411 = vcombine.low %v1405, %v1406
    %v1413 = vunpack.c.l.s4 1966171168
    %v1414 = vunpack.c.0.s8 %v1413
    %v1415 = vlaneseq
    %v1416 = vshrl.u32 %v1415, 7
    %v1417 = vsub.s32 %v1414, %v1416
    %v1418 = vrot.slane %v1411, %v1417
    %v1420 = vunpack.c.l.s4 1966171168
    %v1421 = vunpack.c.0.s8 %v1420
    %v1422 = vlaneseq
    %v1423 = vshrl.u32 %v1422, 7
    %v1424 = vsub.s32 %v1421, %v1423
    %v1425 = vrot.slane %v1407, %v1424
    %v1426 = vcombine.low %v1418, %v1425
    %v1428 = vunpack.c.l.s4 1966171168
    %v1429 = vunpack.c.0.s8 %v1428
    %v1430 = vlaneseq
    %v1431 = vshrl.u32 %v1430, 7
    %v1432 = vsub.s32 %v1429, %v1431
    %v1433 = vrot.slane %v1426, %v1432
    %v1435 = vsub.f32 %v1388, %v1433
    %v1436 = vmul.f32 %v1171, %v1393
    %v1437 = vmul.f32 %v1173, %v1397
    %v1438 = vmul.f32 %v1292, %v1401
    %v1440 = vlaneseq
    %v1441 = vshrl.u32 %v1440, 7
    %v1442 = vsub.s32 0, %v1441
    %v1443 = vrot.slane %v1435, %v1442
    %v1444 = vlaneseq
    %v1445 = vshrl.u32 %v1444, 7
    %v1446 = vsub.s32 1, %v1445
    %v1447 = vrot.slane %v1435, %v1446
    %v1448 = vlaneseq
    %v1449 = vshrl.u32 %v1448, 7
    %v1450 = vsub.s32 2, %v1449
    %v1451 = vrot.slane %v1435, %v1450
    %v1455 = vadd.f32 %v1436, %v1443
    %v1456 = vadd.f32 %v1437, %v1447
    %v1457 = vadd.f32 %v1438, %v1451
    %v1458 = vmax.f32 %v1455, 0.0
    %v1459 = vmax.f32 %v1456, 0.0
    %v1460 = vmax.f32 %v1457, 0.0
    %v1461 = vpack.c.bf16 %v1458, %v1458
    %v1462 = vpack.c.bf16 %v1459, %v1459
    %v1463 = vpack.c.bf16 %v1460, %v1460
    %v1464 = vld [vmem:[#allocation5] sm:$0xf]
    %v1465 = vld [vmem:[#allocation5 + $0x4] sm:$0xf]
    %v1466 = vld [vmem:[#allocation5 + $0x8] sm:$0xf]
    %v1467 = vld [vmem:[#allocation5 + $0xc] sm:$0xf]
    %v1468 = vld [vmem:[#allocation5 + $0x10] sm:$0xf]
    %v1469 = vld [vmem:[#allocation5 + $0x14] sm:$0xf]
    %v1470 = vld [vmem:[#allocation5 + $0x18] sm:$0xf]
    %v1471 = vld [vmem:[#allocation5 + $0x1c] sm:$0xf]
    %v1472 = vld [vmem:[#allocation5 + $0x20] sm:$0xf]
    %v1473 = vld [vmem:[#allocation5 + $0x24] sm:$0xf]
    %v1474 = vld [vmem:[#allocation5 + $0x28] sm:$0xf]
    %v1475 = vld [vmem:[#allocation5 + $0x2c] sm:$0xf]
    %v1476 = vld [vmem:[#allocation5 + $0x30] sm:$0xf]
    %v1477 = vld [vmem:[#allocation5 + $0x34] sm:$0xf]
    %v1478 = vld [vmem:[#allocation5 + $0x38] sm:$0xf]
    %v1479 = vld [vmem:[#allocation5 + $0x3c] sm:$0xf]
    %v1480 = vld [vmem:[#allocation5 + $0x40] sm:$0xf]
    %v1481 = vld [vmem:[#allocation5 + $0x44] sm:$0xf]
    %v1482 = vld [vmem:[#allocation5 + $0x48] sm:$0xf]
    %v1483 = vld [vmem:[#allocation5 + $0x4c] sm:$0xf]
    %v1484 = vld [vmem:[#allocation5 + $0x50] sm:$0xf]
    %v1485 = vld [vmem:[#allocation5 + $0x54] sm:$0xf]
    %v1486 = vld [vmem:[#allocation5 + $0x58] sm:$0xf]
    %v1487 = vld [vmem:[#allocation5 + $0x5c] sm:$0xf]
    %v1488 = vld [vmem:[#allocation5 + $0x60] sm:$0xf]
    %v1489 = vld [vmem:[#allocation5 + $0x64] sm:$0xf]
    %v1490 = vld [vmem:[#allocation5 + $0x68] sm:$0xf]
    %v1491 = vld [vmem:[#allocation5 + $0x6c] sm:$0xf]
    %v1492 = vld [vmem:[#allocation5 + $0x70] sm:$0xf]
    %v1493 = vld [vmem:[#allocation5 + $0x74] sm:$0xf]
    %v1494 = vld [vmem:[#allocation5 + $0x78] sm:$0xf]
    %v1495 = vld [vmem:[#allocation5 + $0x7c] sm:$0xf]
    %v1496 = vld [vmem:[#allocation5 + $0x80] sm:$0xf]
    %v1497 = vld [vmem:[#allocation5 + $0x84] sm:$0xf]
    %v1498 = vld [vmem:[#allocation5 + $0x88] sm:$0xf]
    %v1499 = vld [vmem:[#allocation5 + $0x8c] sm:$0xf]
    %v1500 = vld [vmem:[#allocation5 + $0x90] sm:$0xf]
    %v1501 = vld [vmem:[#allocation5 + $0x94] sm:$0xf]
    %v1502 = vld [vmem:[#allocation5 + $0x98] sm:$0xf]
    %v1503 = vld [vmem:[#allocation5 + $0x9c] sm:$0xf]
    %v1504 = vld [vmem:[#allocation5 + $0xa0] sm:$0xf]
    %v1505 = vld [vmem:[#allocation5 + $0xa4] sm:$0xf]
    %v1506 = vld [vmem:[#allocation5 + $0xa8] sm:$0xf]
    %v1507 = vld [vmem:[#allocation5 + $0xac] sm:$0xf]
    %v1508 = vld [vmem:[#allocation5 + $0xb0] sm:$0xf]
    %v1509 = vld [vmem:[#allocation5 + $0xb4] sm:$0xf]
    %v1510 = vld [vmem:[#allocation5 + $0xb8] sm:$0xf]
    %v1511 = vld [vmem:[#allocation5 + $0xbc] sm:$0xf]
    %v1512 = vld [vmem:[%s5] sm:$0x1]
    %v1514 = vlaneseq
    %v1515 = vshrl.u32 %v1514, 7
    %v1516 = vsub.s32 0, %v1515
    %v1517 = vrot.slane %v1512, %v1516
    %v1567 = vunpack.c.l.b16 %v1464
    %v1568 = vunpack.c.l.b16 %v1465
    %v1569 = vunpack.c.l.b16 %v1466
    %v1570 = vunpack.c.l.b16 %v1467
    %v1571 = vunpack.c.l.b16 %v1468
    %v1572 = vunpack.c.l.b16 %v1469
    %v1573 = vunpack.c.l.b16 %v1470
    %v1574 = vunpack.c.l.b16 %v1471
    %v1575 = vunpack.c.l.b16 %v1472
    %v1576 = vunpack.c.l.b16 %v1473
    %v1577 = vunpack.c.l.b16 %v1474
    %v1578 = vunpack.c.l.b16 %v1475
    %v1579 = vunpack.c.l.b16 %v1476
    %v1580 = vunpack.c.l.b16 %v1477
    %v1581 = vunpack.c.l.b16 %v1478
    %v1582 = vunpack.c.l.b16 %v1479
    %v1583 = vunpack.c.l.b16 %v1480
    %v1584 = vunpack.c.l.b16 %v1481
    %v1585 = vunpack.c.l.b16 %v1482
    %v1586 = vunpack.c.l.b16 %v1483
    %v1587 = vunpack.c.l.b16 %v1484
    %v1588 = vunpack.c.l.b16 %v1485
    %v1589 = vunpack.c.l.b16 %v1486
    %v1590 = vunpack.c.l.b16 %v1487
    %v1591 = vunpack.c.l.b16 %v1488
    %v1592 = vunpack.c.l.b16 %v1489
    %v1593 = vunpack.c.l.b16 %v1490
    %v1594 = vunpack.c.l.b16 %v1491
    %v1595 = vunpack.c.l.b16 %v1492
    %v1596 = vunpack.c.l.b16 %v1493
    %v1597 = vunpack.c.l.b16 %v1494
    %v1598 = vunpack.c.l.b16 %v1495
    %v1599 = vunpack.c.l.b16 %v1496
    %v1600 = vunpack.c.l.b16 %v1497
    %v1601 = vunpack.c.l.b16 %v1498
    %v1602 = vunpack.c.l.b16 %v1499
    %v1603 = vunpack.c.l.b16 %v1500
    %v1604 = vunpack.c.l.b16 %v1501
    %v1605 = vunpack.c.l.b16 %v1502
    %v1606 = vunpack.c.l.b16 %v1503
    %v1607 = vunpack.c.l.b16 %v1504
    %v1608 = vunpack.c.l.b16 %v1505
    %v1609 = vunpack.c.l.b16 %v1506
    %v1610 = vunpack.c.l.b16 %v1507
    %v1611 = vunpack.c.l.b16 %v1508
    %v1612 = vunpack.c.l.b16 %v1509
    %v1613 = vunpack.c.l.b16 %v1510
    %v1614 = vunpack.c.l.b16 %v1511
    %v1615 = vpack.c.b16 %v1568, %v1567
    %v1616 = vpack.c.b16 %v1570, %v1569
    %v1617 = vpack.c.b16 %v1572, %v1571
    %v1618 = vpack.c.b16 %v1574, %v1573
    %v1619 = vpack.c.b16 %v1576, %v1575
    %v1620 = vpack.c.b16 %v1578, %v1577
    %v1621 = vpack.c.b16 %v1580, %v1579
    %v1622 = vpack.c.b16 %v1582, %v1581
    %v1623 = vpack.c.b16 %v1584, %v1583
    %v1624 = vpack.c.b16 %v1586, %v1585
    %v1625 = vpack.c.b16 %v1588, %v1587
    %v1626 = vpack.c.b16 %v1590, %v1589
    %v1627 = vpack.c.b16 %v1592, %v1591
    %v1628 = vpack.c.b16 %v1594, %v1593
    %v1629 = vpack.c.b16 %v1596, %v1595
    %v1630 = vpack.c.b16 %v1598, %v1597
    %v1631 = vpack.c.b16 %v1600, %v1599
    %v1632 = vpack.c.b16 %v1602, %v1601
    %v1633 = vpack.c.b16 %v1604, %v1603
    %v1634 = vpack.c.b16 %v1606, %v1605
    %v1635 = vpack.c.b16 %v1608, %v1607
    %v1636 = vpack.c.b16 %v1610, %v1609
    %v1637 = vpack.c.b16 %v1612, %v1611
    %v1638 = vpack.c.b16 %v1614, %v1613
    %1663 = vmatprep.subr.bf16.mxu0 0
    %1664 = vmatpush1.bf16.msra.mxu0 %v1615
    %1665 = vmatprep.subr.bf16.mxu0 0
    %1666 = vmatpush1.bf16.msra.mxu0 %v1616
    %1667 = vmatprep.subr.bf16.mxu0 0
    %1668 = vmatpush1.bf16.msra.mxu0 %v1617
    %1669 = vmatprep.subr.bf16.mxu0 0
    %1670 = vmatpush1.bf16.msra.mxu0 %v1618
    %1671 = vmatprep.subr.bf16.mxu0 0
    %1672 = vmatpush1.bf16.msra.mxu0 %v1619
    %1673 = vmatprep.subr.bf16.mxu0 0
    %1674 = vmatpush1.bf16.msra.mxu0 %v1620
    %1675 = vmatprep.subr.bf16.mxu0 0
    %1676 = vmatpush1.bf16.msra.mxu0 %v1621
    %1677 = vmatprep.subr.bf16.mxu0 0
    %1678 = vmatpush1.bf16.msra.mxu0 %v1622
    %1679 = vmatprep.subr.bf16.mxu0 0
    %1680 = vmatpush1.bf16.msra.mxu0 %v1623
    %1681 = vmatprep.subr.bf16.mxu0 0
    %1682 = vmatpush1.bf16.msra.mxu0 %v1624
    %1683 = vmatprep.subr.bf16.mxu0 0
    %1684 = vmatpush1.bf16.msra.mxu0 %v1625
    %1685 = vmatprep.subr.bf16.mxu0 0
    %1686 = vmatpush1.bf16.msra.mxu0 %v1626
    %1687 = vmatprep.subr.bf16.mxu0 0
    %1688 = vmatpush1.bf16.msra.mxu0 %v1627
    %1689 = vmatprep.subr.bf16.mxu0 0
    %1690 = vmatpush1.bf16.msra.mxu0 %v1628
    %1691 = vmatprep.subr.bf16.mxu0 0
    %1692 = vmatpush1.bf16.msra.mxu0 %v1629
    %1693 = vmatprep.subr.bf16.mxu0 0
    %1694 = vmatpush1.bf16.msra.mxu0 %v1630
    %1695 = vmatprep.mubr.bf16.mxu0 %v1462
    %1696 = vmatmul.mubr.bf16.gmra.mrb[0].mxu0 %v1461
    %v1697 = vpop.f32.mrb[0].mxu0
    %v1698 = vadd.f32 %v1517, %v1697
    %v1699 = vpop.f32.mrb[0].mxu0
    %v1700 = vpop.f32.mrb[0].mxu0
    %v1701 = vpop.f32.mrb[0].mxu0
    %1702 = vdwg.mxu0
    %1703 = vmatprep.subr.bf16.mxu0 0
    %1704 = vmatpush1.bf16.msra.mxu0 %v1631
    %1705 = vmatprep.subr.bf16.mxu0 0
    %1706 = vmatpush1.bf16.msra.mxu0 %v1632
    %1707 = vmatprep.subr.bf16.mxu0 0
    %1708 = vmatpush1.bf16.msra.mxu0 %v1633
    %1709 = vmatprep.subr.bf16.mxu0 0
    %1710 = vmatpush1.bf16.msra.mxu0 %v1634
    %1711 = vmatprep.subr.bf16.mxu0 0
    %1712 = vmatpush1.bf16.msra.mxu0 %v1635
    %1713 = vmatprep.subr.bf16.mxu0 0
    %1714 = vmatpush1.bf16.msra.mxu0 %v1636
    %1715 = vmatprep.subr.bf16.mxu0 0
    %1716 = vmatpush1.bf16.msra.mxu0 %v1637
    %1717 = vmatprep.subr.bf16.mxu0 0
    %1718 = vmatpush1.bf16.msra.mxu0 %v1638
    %1719 = vmatprep.subr.bf16.mxu0 0
    %1720 = vmatpush1.bf16.msra.mxu0 0
    %1721 = vmatprep.subr.bf16.mxu0 0
    %1722 = vmatpush1.bf16.msra.mxu0 0
    %1723 = vmatprep.subr.bf16.mxu0 0
    %1724 = vmatpush1.bf16.msra.mxu0 0
    %1725 = vmatprep.subr.bf16.mxu0 0
    %1726 = vmatpush1.bf16.msra.mxu0 0
    %1727 = vmatprep.subr.bf16.mxu0 0
    %1728 = vmatpush1.bf16.msra.mxu0 0
    %1729 = vmatprep.subr.bf16.mxu0 0
    %1730 = vmatpush1.bf16.msra.mxu0 0
    %1731 = vmatprep.subr.bf16.mxu0 0
    %1732 = vmatpush1.bf16.msra.mxu0 0
    %1733 = vmatprep.subr.bf16.mxu0 0
    %1734 = vmatpush1.bf16.msra.mxu0 0
    %1735 = vmatprep.mubr.bf16.mxu0 0
    %1736 = vmatmul.mubr.bf16.gmra.mrb[0].mxu0 %v1463
    %v1737 = vpop.f32.mrb[0].mxu0
    %v1738 = vadd.f32 %v1698, %v1737
    %v1739 = vpop.f32.mrb[0].mxu0
    %v1740 = vpop.f32.mrb[0].mxu0
    %v1741 = vpop.f32.mrb[0].mxu0
    %1742 = vdwg.mxu0
    %1743 = vst [vmem:[#allocation7] sm:$0x3] %v1738
    // Predicated region
    $region34: #{imaging_model_wrapper_forward.1} parent=1 // pred_check
      _
    $region35: #{imaging_model_wrapper_forward.1} parent=1 // pred_check_branch
      %1745 = sbr.rel (0) target = $region37
    $region36: #{imaging_model_wrapper_forward.1} parent=1 // pred_region
      %s1747 = ssub.s32 32, 32
      %1748 = vsyncadd [#allocation4], %s1747
      %s1750 = sshll.u32 [#allocation7], 4
      %s1751 = int_to_ptr.vmem [resolvable:$true] %s1750
      %1753 = dma.vmem_to_hbm [thread:$0]  %s1751, 32, %s6, [#allocation4]
    $region37: #{imaging_model_wrapper_forward.1} parent=1 // pred_fallthru
      _
    // Predicated region
    $region38: #{imaging_model_wrapper_forward.1} parent=1 // pred_check
      _
    $region39: #{imaging_model_wrapper_forward.1} parent=1 // pred_check_branch
      %1755 = sbr.rel (0) target = $region41
    $region40: #{imaging_model_wrapper_forward.1} parent=1 // pred_region
      %1756 = dma.done [#allocation4], 32
    $region41: #{imaging_model_wrapper_forward.1} parent=1 // pred_fallthru
      _
    %1757 = vsyncpa [#allocation3], 1
    %1758 = vsyncpa [#allocation6], 1
    %1759 = vsyncpa [#allocation4], 1

</llo_original>
